<compile_context>
chip_gen: v7x
topology: tpu7x:2x2x1
jax: 0.10.0
libtpu: 0.0.40
codegen_flags: <defaults>
</compile_context>

<pallas_src>
import numpy as np
import jax
import jax.numpy as jnp
from jax.experimental import pallas as pl
from jax.experimental.pallas import tpu as pltpu  # TPU backend (no extra params needed)

# ---------------- config (small, deterministic) ----------------
B = 2                 # number of examples
S = 8                 # sequence length
H = 32                # hidden_size
MAX_SPAN_WIDTH = 4
NUM_ENTITIES = 16
ENTITY_DIM = 32       # entity_embedding_dim (== H so dot-product similarity is defined)
K = 4                 # top-k similar entities per span
F = H * (MAX_SPAN_WIDTH + 2)   # span_embedding Linear in_features (192)

# Static span enumeration: spans (i, j), j in [i, min(i+W, S)-1]
_starts, _ends = [], []
for _i in range(S):
    for _j in range(_i, min(_i + MAX_SPAN_WIDTH, S)):
        _starts.append(_i)
        _ends.append(_j)
NS = len(_starts)              # spans per example (26)
R = B * NS                     # total spans (52)
N_SPANS = R

# Compile-time tables.
#   SPAN_MASK_BIAS_FULL[r, b*S+s] = 0 if token s of example b is inside span r
#   (and r belongs to example b), else -1e30.  Lets one [R, B*S, H] max-pool cover
#   the whole batch with a single additive bias (no compare/select, no per-b loop).
#   SEL[r, b] = 1 iff span r belongs to example b (broadcasts the CLS row via a dot).
_mask_bias_full = np.full((R, B * S), -1e30, np.float32)
_sel = np.zeros((R, B), np.float32)
_width = np.zeros((R, 1), np.float32)
for _b in range(B):
    for _n, (_si, _sj) in enumerate(zip(_starts, _ends)):
        _r = _b * NS + _n
        _sel[_r, _b] = 1.0
        _width[_r, 0] = float(_sj - _si + 1)
        _mask_bias_full[_r, _b * S + _si:_b * S + _sj + 1] = 0.0
SPAN_MASK_BIAS_FULL = _mask_bias_full
SEL = _sel
SPAN_WIDTH_ALL = _width

# Normalized star adjacency over the K retrieved entity nodes (slot 0 = top-1 entity
# is the hub; A_hat = D^-1/2 (A + I) D^-1/2), kron-expanded to lane space.
_A_HAT = np.zeros((K, K), np.float32)
_A_HAT[0, 0] = 1.0 / K
for _a in range(1, K):
    _A_HAT[0, _a] = _A_HAT[_a, 0] = 1.0 / np.sqrt(2.0 * K)
    _A_HAT[_a, _a] = 0.5
KRON_A = np.kron(_A_HAT, np.eye(H, dtype=np.float32))   # [K*H, K*H]


# ---------------- the fused kernel ----------------
def fused_kernel(emb_ref, maskb_ref, sel_ref, span_const_ref, w_sc_ref, ent_t_ref,
                 g1_ref, b1_ref, g2_ref, b2_ref, out_ref, tok_ref):
    # emb:(B,S,H) f32 | maskb:(R,B*S) f32 | sel:(R,B) bf16 | span_const:(R,H) f32
    # w_sc:(2H,H) bf16 | ent_t:(E,NE) bf16 | g1:(K*NE,K*H) bf16 | b1:(1,K*H) f32
    # g2:(K*H,K*H) bf16 | b2:(1,K*H) f32 | out:(R,(K+1)*H) f32 | tok:(B,H) f32
    emb = emb_ref[...]                                        # [B, S, H]
    cls = emb[:, 0, :]                                        # [B, H]  CLS rows
    tok_ref[...] = cls

    # --- span max-pooling for the whole batch in one shot (additive mask bias) ---
    emb_flat = emb.reshape(B * S, H)                          # layout-compatible reshape
    masked = emb_flat[None, :, :] + maskb_ref[...][:, :, None]   # [R, B*S, H]
    span_max = jnp.max(masked, axis=1)                        # [R, H]

    # --- structure-folded span_embedding Linear (bf16 MXU operands, f32 accum) ---
    # feats @ W  ==  [span_max | cls_of_example] @ [W_span ; W_cls]  + width-term + bias
    cls_rows = jnp.dot(sel_ref[...], cls.astype(jnp.bfloat16),
                       preferred_element_type=jnp.float32)    # [R, H] per-span CLS
    feats = jnp.concatenate([span_max, cls_rows], axis=-1)    # [R, 2H]
    reps = (jnp.dot(feats.astype(jnp.bfloat16), w_sc_ref[...],
                    preferred_element_type=jnp.float32)
            + span_const_ref[...])                            # [R, H]

    # --- entity similarity + in-kernel top-K (iterative argmax, low index on ties) ---
    scores = jnp.dot(reps.astype(jnp.bfloat16), ent_t_ref[...],
                     preferred_element_type=jnp.float32)      # [R, NE], VMEM-only
    col = jax.lax.broadcasted_iota(jnp.int32, (R, NUM_ENTITIES), 1)
    remaining = scores
    onehots = []
    for _ in range(K):
        m = jnp.max(remaining, axis=-1, keepdims=True)        # [R, 1]
        idx = jnp.min(jnp.where(remaining >= m, col, NUM_ENTITIES),
                      axis=-1, keepdims=True)                 # first argmax
        oh = col == idx
        onehots.append(oh.astype(jnp.bfloat16))
        remaining = jnp.where(oh, -jnp.inf, remaining)
    oh_lane = jnp.concatenate(onehots, axis=-1)               # [R, K*NE] lane-dense

    # --- 2-layer GCN, fully folded: gather + W1 + A_hat -> g1, W2 + A_hat -> g2 ---
    h = jnp.maximum(
        jnp.dot(oh_lane, g1_ref[...], preferred_element_type=jnp.float32)
        + b1_ref[...], 0.0)                                   # [R, K*H] = [52, 128]
    g = (jnp.dot(h.astype(jnp.bfloat16), g2_ref[...],
                 preferred_element_type=jnp.float32)
         + b2_ref[...])                                       # [R, K*H]

    # --- fused update_span_representation: [span_rep | node_0 .. node_{K-1}] ---
    out_ref[...] = jnp.concatenate([reps, g], axis=-1)        # [R, (K+1)*H] = [52, 160]


def fused_forward(embeddings, p):
    # Whole problem (<0.5 MiB) fits in VMEM on v5e/v6e/v7x -> no grid, full-array
    # blocks, a single kernel invocation; per-step pipeline overhead is paid once.
    return pl.pallas_call(
        fused_kernel,
        out_shape=(jax.ShapeDtypeStruct((R, (K + 1) * H), jnp.float32),
                   jax.ShapeDtypeStruct((B, H), jnp.float32)),
    )(embeddings,
      p["mask_bias"], p["sel"], p["span_const"], p["w_sc"], p["ent_t"],
      p["gcn_g1"], p["gcn_b1t"], p["gcn_g2"], p["gcn_b2t"])


# ---------------- params ----------------
def init_params(key):
    ks = jax.random.split(key, 4)
    sc = 0.02
    return {
        "span_w": sc * jax.random.normal(ks[0], (F, H), jnp.float32),
        "span_b": jnp.zeros((1, H), jnp.float32),
        "entity_emb": sc * jax.random.normal(ks[1], (NUM_ENTITIES, ENTITY_DIM), jnp.float32),
        "gcn_w1": sc * jax.random.normal(ks[2], (ENTITY_DIM, H), jnp.float32),
        "gcn_b1": jnp.zeros((1, H), jnp.float32),
        "gcn_w2": sc * jax.random.normal(ks[3], (H, H), jnp.float32),
        "gcn_b2": jnp.zeros((1, H), jnp.float32),
    }


def pack_params(params):
    """One-time weight folding / layout prep, kept OUT of the jitted forward."""
    span_w = params["span_w"]
    w_span = span_w[0:H, :]                                      # rows hit by span max-pool
    w_cls = span_w[H:2 * H, :]                                   # rows hit by CLS block
    w_wsum = jnp.sum(span_w[2 * H:, :], axis=0, keepdims=True)   # width block folded
    span_const = jnp.asarray(SPAN_WIDTH_ALL) * w_wsum + params["span_b"]   # [R, H]

    ent = params["entity_emb"]
    ent_w1 = ent @ params["gcn_w1"]                              # gather folded into W1
    kron_a = jnp.asarray(KRON_A)
    eye_k = jnp.eye(K, dtype=jnp.float32)
    g1 = jnp.kron(eye_k, ent_w1) @ kron_a                        # [K*NE, K*H]
    g2 = jnp.kron(eye_k, params["gcn_w2"]) @ kron_a              # [K*H, K*H]

    return {
        "mask_bias": jnp.asarray(SPAN_MASK_BIAS_FULL),
        "sel": jnp.asarray(SEL).astype(jnp.bfloat16),
        "span_const": span_const.astype(jnp.float32),
        "w_sc": jnp.concatenate([w_span, w_cls], axis=0).astype(jnp.bfloat16),
        "ent_t": ent.T.astype(jnp.bfloat16),
        "gcn_g1": g1.astype(jnp.bfloat16),
        "gcn_b1t": jnp.tile(params["gcn_b1"], (1, K)),
        "gcn_g2": g2.astype(jnp.bfloat16),
        "gcn_b2t": jnp.tile(params["gcn_b2"], (1, K)),
    }


# ---------------- forward ----------------
@jax.jit
def span_model_forward(embeddings, packed):
    out, token_inputs = fused_forward(embeddings, packed)        # one Pallas launch
    updated_span_reps = out.reshape(R, K + 1, H)                 # free contiguous reshape
    return token_inputs, updated_span_reps


if __name__ == "__main__":
    key = jax.random.PRNGKey(0)
    k_emb, k_params = jax.random.split(key)

    # TODO(synk): BertModel / BertTokenizer have no Pallas equivalent; synthetic
    # contextual token embeddings stand in for the BERT encoder output.
    embeddings = jax.random.normal(k_emb, (B, S, H), jnp.float32)
    params = init_params(k_params)
    packed = pack_params(params)

    # TODO(synk): get_top_k_similar_entities is undefined (`pass`) in the reference;
    # implemented as dot-product similarity + iterative in-kernel top-K.
    # TODO(synk): build_subgraph's torch_geometric graph is underspecified; nodes are
    # the K retrieved entities with a normalized star adjacency (top-1 entity as hub),
    # baked as kron(A_hat, I_H) into the GCN weights.
    token_inputs, updated_span_reps = span_model_forward(embeddings, packed)
    jax.block_until_ready((token_inputs, updated_span_reps))

    assert token_inputs.shape == (B, H)
    assert updated_span_reps.shape == (N_SPANS, K + 1, H)
    assert jnp.all(jnp.isfinite(token_inputs))
    assert jnp.all(jnp.isfinite(updated_span_reps))
    assert jnp.allclose(token_inputs, embeddings[:, 0, :])       # CLS pass-through is exact
    print("KERNEL_OK")
</pallas_src>

<mosaic_0001>
module attributes {stable_mosaic.version = 11 : i64} {
  func.func @fused_kernel(%arg0: memref<2x8x32xf32, #tpu.memory_space<vmem>>, %arg1: memref<52x16xf32, #tpu.memory_space<vmem>>, %arg2: memref<52x2xbf16, #tpu.memory_space<vmem>>, %arg3: memref<52x32xf32, #tpu.memory_space<vmem>>, %arg4: memref<64x32xbf16, #tpu.memory_space<vmem>>, %arg5: memref<32x16xbf16, #tpu.memory_space<vmem>>, %arg6: memref<64x128xbf16, #tpu.memory_space<vmem>>, %arg7: memref<1x128xf32, #tpu.memory_space<vmem>>, %arg8: memref<128x128xbf16, #tpu.memory_space<vmem>>, %arg9: memref<1x128xf32, #tpu.memory_space<vmem>>, %arg10: memref<52x160xf32, #tpu.memory_space<vmem>>, %arg11: memref<2x32xf32, #tpu.memory_space<vmem>>) attributes {dimension_semantics = [], scalar_prefetch = 0 : i64, scratch_operands = 0 : i64, tpu.core_type = #tpu.core_type<tc>} {
    %c0 = arith.constant 0 : index
    %c0_0 = arith.constant 0 : index
    %c0_1 = arith.constant 0 : index
    %0 = vector.load %arg0[%c0, %c0_0, %c0_1] : memref<2x8x32xf32, #tpu.memory_space<vmem>>, vector<2x8x32xf32>
    %1 = vector.extract_strided_slice %0 {offsets = [0, 0, 0], sizes = [2, 1, 32], strides = [1, 1, 1]} : vector<2x8x32xf32> to vector<2x1x32xf32>
    %2 = vector.shape_cast %1 : vector<2x1x32xf32> to vector<2x32xf32>
    %c0_2 = arith.constant 0 : index
    %c0_3 = arith.constant 0 : index
    %3 = vector.load %arg11[%c0_2, %c0_3] : memref<2x32xf32, #tpu.memory_space<vmem>>, vector<2x32xf32>
    tpu.vector_store %arg11[%c0_2, %c0_3], %2 {strides = array<i32>} : memref<2x32xf32, #tpu.memory_space<vmem>>, vector<2x32xf32>,
    %4 = vector.shape_cast %0 : vector<2x8x32xf32> to vector<16x32xf32>
    %5 = vector.shape_cast %4 : vector<16x32xf32> to vector<1x16x32xf32>
    %c0_4 = arith.constant 0 : index
    %c0_5 = arith.constant 0 : index
    %6 = vector.load %arg1[%c0_4, %c0_5] : memref<52x16xf32, #tpu.memory_space<vmem>>, vector<52x16xf32>
    %7 = vector.shape_cast %6 : vector<52x16xf32> to vector<52x16x1xf32>
    %8 = vector.broadcast %5 : vector<1x16x32xf32> to vector<52x16x32xf32>
    %9 = vector.broadcast %7 : vector<52x16x1xf32> to vector<52x16x32xf32>
    %10 = arith.addf %8, %9 : vector<52x16x32xf32>
    %cst = arith.constant dense<0xFF800000> : vector<52x32xf32>
    %11 = vector.multi_reduction <maximumf>, %10, %cst [1] : vector<52x16x32xf32> to vector<52x32xf32>
    %c0_6 = arith.constant 0 : index
    %c0_7 = arith.constant 0 : index
    %12 = vector.load %arg2[%c0_6, %c0_7] : memref<52x2xbf16, #tpu.memory_space<vmem>>, vector<52x2xbf16>
    %13 = arith.truncf %2 : vector<2x32xf32> to vector<2x32xbf16>
    %cst_8 = arith.constant dense<0.000000e+00> : vector<52x32xf32>
    %14 = tpu.matmul %12, %13, %cst_8 {dimension_numbers = #tpu.dot_dimension_numbers<[1], [0], [0], [1], [0, 0, 1, 1], [], []>} : vector<52x2xbf16>, vector<2x32xbf16>, vector<52x32xf32> -> vector<52x32xf32>
    %15 = tpu.concatenate %11, %14 in 1 : vector<52x32xf32>, vector<52x32xf32> -> vector<52x64xf32>
    %16 = arith.truncf %15 : vector<52x64xf32> to vector<52x64xbf16>
    %c0_9 = arith.constant 0 : index
    %c0_10 = arith.constant 0 : index
    %17 = vector.load %arg4[%c0_9, %c0_10] : memref<64x32xbf16, #tpu.memory_space<vmem>>, vector<64x32xbf16>
    %cst_11 = arith.constant dense<0.000000e+00> : vector<52x32xf32>
    %18 = tpu.matmul %16, %17, %cst_11 {dimension_numbers = #tpu.dot_dimension_numbers<[1], [0], [0], [1], [0, 0, 1, 1], [], []>} : vector<52x64xbf16>, vector<64x32xbf16>, vector<52x32xf32> -> vector<52x32xf32>
    %c0_12 = arith.constant 0 : index
    %c0_13 = arith.constant 0 : index
    %19 = vector.load %arg3[%c0_12, %c0_13] : memref<52x32xf32, #tpu.memory_space<vmem>>, vector<52x32xf32>
    %20 = arith.addf %18, %19 : vector<52x32xf32>
    %21 = arith.truncf %20 : vector<52x32xf32> to vector<52x32xbf16>
    %c0_14 = arith.constant 0 : index
    %c0_15 = arith.constant 0 : index
    %22 = vector.load %arg5[%c0_14, %c0_15] : memref<32x16xbf16, #tpu.memory_space<vmem>>, vector<32x16xbf16>
    %cst_16 = arith.constant dense<0.000000e+00> : vector<52x16xf32>
    %23 = tpu.matmul %21, %22, %cst_16 {dimension_numbers = #tpu.dot_dimension_numbers<[1], [0], [0], [1], [0, 0, 1, 1], [], []>} : vector<52x32xbf16>, vector<32x16xbf16>, vector<52x16xf32> -> vector<52x16xf32>
    %24 = tpu.iota {dimensions = array<i32: 1>} : vector<52x16xi32>
    %cst_17 = arith.constant dense<0xFF800000> : vector<52xf32>
    %25 = vector.multi_reduction <maximumf>, %23, %cst_17 [1] : vector<52x16xf32> to vector<52xf32>
    %26 = vector.shape_cast %25 : vector<52xf32> to vector<52x1xf32>
    %27 = vector.broadcast %26 : vector<52x1xf32> to vector<52x16xf32>
    %28 = arith.cmpf oge, %23, %27 : vector<52x16xf32>
    %c16_i32 = arith.constant 16 : i32
    %29 = vector.broadcast %c16_i32 : i32 to vector<52x16xi32>
    %30 = arith.select %28, %24, %29 : vector<52x16xi1>, vector<52x16xi32>
    %cst_18 = arith.constant dense<2147483647> : vector<52xi32>
    %31 = vector.multi_reduction <minsi>, %30, %cst_18 [1] : vector<52x16xi32> to vector<52xi32>
    %32 = vector.shape_cast %31 : vector<52xi32> to vector<52x1xi32>
    %33 = vector.broadcast %32 : vector<52x1xi32> to vector<52x16xi32>
    %34 = arith.cmpi eq, %24, %33 : vector<52x16xi32>
    %35 = arith.extui %34 : vector<52x16xi1> to vector<52x16xi32>
    %36 = arith.sitofp %35 : vector<52x16xi32> to vector<52x16xf32>
    %37 = arith.truncf %36 : vector<52x16xf32> to vector<52x16xbf16>
    %cst_19 = arith.constant 0xFF800000 : f32
    %38 = vector.broadcast %cst_19 : f32 to vector<52x16xf32>
    %39 = arith.select %34, %38, %23 : vector<52x16xi1>, vector<52x16xf32>
    %cst_20 = arith.constant dense<0xFF800000> : vector<52xf32>
    %40 = vector.multi_reduction <maximumf>, %39, %cst_20 [1] : vector<52x16xf32> to vector<52xf32>
    %41 = vector.shape_cast %40 : vector<52xf32> to vector<52x1xf32>
    %42 = vector.broadcast %41 : vector<52x1xf32> to vector<52x16xf32>
    %43 = arith.cmpf oge, %39, %42 : vector<52x16xf32>
    %c16_i32_21 = arith.constant 16 : i32
    %44 = vector.broadcast %c16_i32_21 : i32 to vector<52x16xi32>
    %45 = arith.select %43, %24, %44 : vector<52x16xi1>, vector<52x16xi32>
    %cst_22 = arith.constant dense<2147483647> : vector<52xi32>
    %46 = vector.multi_reduction <minsi>, %45, %cst_22 [1] : vector<52x16xi32> to vector<52xi32>
    %47 = vector.shape_cast %46 : vector<52xi32> to vector<52x1xi32>
    %48 = vector.broadcast %47 : vector<52x1xi32> to vector<52x16xi32>
    %49 = arith.cmpi eq, %24, %48 : vector<52x16xi32>
    %50 = arith.extui %49 : vector<52x16xi1> to vector<52x16xi32>
    %51 = arith.sitofp %50 : vector<52x16xi32> to vector<52x16xf32>
    %52 = arith.truncf %51 : vector<52x16xf32> to vector<52x16xbf16>
    %cst_23 = arith.constant 0xFF800000 : f32
    %53 = vector.broadcast %cst_23 : f32 to vector<52x16xf32>
    %54 = arith.select %49, %53, %39 : vector<52x16xi1>, vector<52x16xf32>
    %cst_24 = arith.constant dense<0xFF800000> : vector<52xf32>
    %55 = vector.multi_reduction <maximumf>, %54, %cst_24 [1] : vector<52x16xf32> to vector<52xf32>
    %56 = vector.shape_cast %55 : vector<52xf32> to vector<52x1xf32>
    %57 = vector.broadcast %56 : vector<52x1xf32> to vector<52x16xf32>
    %58 = arith.cmpf oge, %54, %57 : vector<52x16xf32>
    %c16_i32_25 = arith.constant 16 : i32
    %59 = vector.broadcast %c16_i32_25 : i32 to vector<52x16xi32>
    %60 = arith.select %58, %24, %59 : vector<52x16xi1>, vector<52x16xi32>
    %cst_26 = arith.constant dense<2147483647> : vector<52xi32>
    %61 = vector.multi_reduction <minsi>, %60, %cst_26 [1] : vector<52x16xi32> to vector<52xi32>
    %62 = vector.shape_cast %61 : vector<52xi32> to vector<52x1xi32>
    %63 = vector.broadcast %62 : vector<52x1xi32> to vector<52x16xi32>
    %64 = arith.cmpi eq, %24, %63 : vector<52x16xi32>
    %65 = arith.extui %64 : vector<52x16xi1> to vector<52x16xi32>
    %66 = arith.sitofp %65 : vector<52x16xi32> to vector<52x16xf32>
    %67 = arith.truncf %66 : vector<52x16xf32> to vector<52x16xbf16>
    %cst_27 = arith.constant 0xFF800000 : f32
    %68 = vector.broadcast %cst_27 : f32 to vector<52x16xf32>
    %69 = arith.select %64, %68, %54 : vector<52x16xi1>, vector<52x16xf32>
    %cst_28 = arith.constant dense<0xFF800000> : vector<52xf32>
    %70 = vector.multi_reduction <maximumf>, %69, %cst_28 [1] : vector<52x16xf32> to vector<52xf32>
    %71 = vector.shape_cast %70 : vector<52xf32> to vector<52x1xf32>
    %72 = vector.broadcast %71 : vector<52x1xf32> to vector<52x16xf32>
    %73 = arith.cmpf oge, %69, %72 : vector<52x16xf32>
    %c16_i32_29 = arith.constant 16 : i32
    %74 = vector.broadcast %c16_i32_29 : i32 to vector<52x16xi32>
    %75 = arith.select %73, %24, %74 : vector<52x16xi1>, vector<52x16xi32>
    %cst_30 = arith.constant dense<2147483647> : vector<52xi32>
    %76 = vector.multi_reduction <minsi>, %75, %cst_30 [1] : vector<52x16xi32> to vector<52xi32>
    %77 = vector.shape_cast %76 : vector<52xi32> to vector<52x1xi32>
    %78 = vector.broadcast %77 : vector<52x1xi32> to vector<52x16xi32>
    %79 = arith.cmpi eq, %24, %78 : vector<52x16xi32>
    %80 = arith.extui %79 : vector<52x16xi1> to vector<52x16xi32>
    %81 = arith.sitofp %80 : vector<52x16xi32> to vector<52x16xf32>
    %82 = arith.truncf %81 : vector<52x16xf32> to vector<52x16xbf16>
    %83 = tpu.concatenate %37, %52, %67, %82 in 1 : vector<52x16xbf16>, vector<52x16xbf16>, vector<52x16xbf16>, vector<52x16xbf16> -> vector<52x64xbf16>
    %c0_31 = arith.constant 0 : index
    %c0_32 = arith.constant 0 : index
    %84 = vector.load %arg6[%c0_31, %c0_32] : memref<64x128xbf16, #tpu.memory_space<vmem>>, vector<64x128xbf16>
    %cst_33 = arith.constant dense<0.000000e+00> : vector<52x128xf32>
    %85 = tpu.matmul %83, %84, %cst_33 {dimension_numbers = #tpu.dot_dimension_numbers<[1], [0], [0], [1], [0, 0, 1, 1], [], []>} : vector<52x64xbf16>, vector<64x128xbf16>, vector<52x128xf32> -> vector<52x128xf32>
    %c0_34 = arith.constant 0 : index
    %c0_35 = arith.constant 0 : index
    %86 = vector.load %arg7[%c0_34, %c0_35] : memref<1x128xf32, #tpu.memory_space<vmem>>, vector<1x128xf32>
    %87 = vector.broadcast %86 : vector<1x128xf32> to vector<52x128xf32>
    %88 = arith.addf %85, %87 : vector<52x128xf32>
    %cst_36 = arith.constant 0.000000e+00 : f32
    %89 = vector.broadcast %cst_36 : f32 to vector<52x128xf32>
    %90 = arith.maximumf %88, %89 : vector<52x128xf32>
    %91 = arith.truncf %90 : vector<52x128xf32> to vector<52x128xbf16>
    %c0_37 = arith.constant 0 : index
    %c0_38 = arith.constant 0 : index
    %92 = vector.load %arg8[%c0_37, %c0_38] : memref<128x128xbf16, #tpu.memory_space<vmem>>, vector<128x128xbf16>
    %cst_39 = arith.constant dense<0.000000e+00> : vector<52x128xf32>
    %93 = tpu.matmul %91, %92, %cst_39 {dimension_numbers = #tpu.dot_dimension_numbers<[1], [0], [0], [1], [0, 0, 1, 1], [], []>} : vector<52x128xbf16>, vector<128x128xbf16>, vector<52x128xf32> -> vector<52x128xf32>
    %c0_40 = arith.constant 0 : index
    %c0_41 = arith.constant 0 : index
    %94 = vector.load %arg9[%c0_40, %c0_41] : memref<1x128xf32, #tpu.memory_space<vmem>>, vector<1x128xf32>
    %95 = vector.broadcast %94 : vector<1x128xf32> to vector<52x128xf32>
    %96 = arith.addf %93, %95 : vector<52x128xf32>
    %97 = tpu.concatenate %20, %96 in 1 : vector<52x32xf32>, vector<52x128xf32> -> vector<52x160xf32>
    %c0_42 = arith.constant 0 : index
    %c0_43 = arith.constant 0 : index
    %98 = vector.load %arg10[%c0_42, %c0_43] : memref<52x160xf32, #tpu.memory_space<vmem>>, vector<52x160xf32>
    tpu.vector_store %arg10[%c0_42, %c0_43], %97 {strides = array<i32>} : memref<52x160xf32, #tpu.memory_space<vmem>>, vector<52x160xf32>,
    return
  }
}

</mosaic_0001>

<llo_original>
// kernel: span_model_forward.1
$region0: #{span_model_forward.1}
  #allocation0 [shape = 'u32[]', space=smem, size = 0x4, offset = 0x4, fixed_abs, tag = 'smem constant byte address 0x4 - core index']
  #allocation1 [shape = 'u32[144,128]{1,0:T(1,128)}', space=vmem, size = 0x12000, scoped, tag = 'internal scratch']
  %s0 = inlined_call_operand.vmem [shape: f32[2,8,32], index: 0, kind: input, shape index: {}]
  %s1 = inlined_call_operand.vmem [shape: f32[52,16], index: 1, kind: input, shape index: {}]
  %s2 = inlined_call_operand.vmem [shape: bf16[52,2], index: 2, kind: input, shape index: {}]
  %s3 = inlined_call_operand.vmem [shape: f32[52,32], index: 3, kind: input, shape index: {}]
  %s4 = inlined_call_operand.vmem [shape: bf16[64,32], index: 4, kind: input, shape index: {}]
  %s5 = inlined_call_operand.vmem [shape: bf16[32,16], index: 5, kind: input, shape index: {}]
  %s6 = inlined_call_operand.vmem [shape: bf16[64,128], index: 6, kind: input, shape index: {}]
  %s7 = inlined_call_operand.vmem [shape: f32[1,128], index: 7, kind: input, shape index: {}]
  %s8 = inlined_call_operand.vmem [shape: bf16[128,128], index: 8, kind: input, shape index: {}]
  %s9 = inlined_call_operand.vmem [shape: f32[1,128], index: 9, kind: input, shape index: {}]
  %s10 = inlined_call_operand.vmem [shape: f32[52,160], index: 10, kind: output, shape index: {0}]
  %s11 = inlined_call_operand.hbm [shape: f32[2,32], index: 11, kind: output, shape index: {1}]
  %12 = xla_tuple %s10, %s11
  %s13 = sld [smem:[#allocation0]]
  $region58: #{span_model_forward.1} parent=0
    _
  %s15 = ssub.s32 1, %s13
  %s16 = scalar_select 0, %s15, %s13
  $region1: #{span_model_forward.1} parent=0
    #allocation2 [shape = 'u8[1024]{0}', space=vmem, size = 0x400, scoped, tag = 'output window, operand 1, single buffered']
    #allocation3 [shape = 's32[1]{0}', space=sflag, size = 0x4, scoped, tag = 'scoped memory for span_model_forward.1']
    %17 = vsyncpa [#allocation3], 0
    // Predicated region
    $region2: #{span_model_forward.1} parent=1 // pred_check
      _
    $region3: #{span_model_forward.1} parent=1 // pred_check_branch
      %19 = sbr.rel (0) target = $region5
    $region4: #{span_model_forward.1} parent=1 // pred_region
      _
    $region5: #{span_model_forward.1} parent=1 // pred_fallthru
      _
    // Predicated region
    $region6: #{span_model_forward.1} parent=1 // pred_check
      _
    $region7: #{span_model_forward.1} parent=1 // pred_check_branch
      %21 = sbr.rel (0) target = $region9
    $region8: #{span_model_forward.1} parent=1 // pred_region
      _
    $region9: #{span_model_forward.1} parent=1 // pred_fallthru
      _
    // Predicated region
    $region10: #{span_model_forward.1} parent=1 // pred_check
      _
    $region11: #{span_model_forward.1} parent=1 // pred_check_branch
      %23 = sbr.rel (0) target = $region13
    $region12: #{span_model_forward.1} parent=1 // pred_region
      _
    $region13: #{span_model_forward.1} parent=1 // pred_fallthru
      _
    // Predicated region
    $region14: #{span_model_forward.1} parent=1 // pred_check
      _
    $region15: #{span_model_forward.1} parent=1 // pred_check_branch
      %25 = sbr.rel (0) target = $region17
    $region16: #{span_model_forward.1} parent=1 // pred_region
      _
    $region17: #{span_model_forward.1} parent=1 // pred_fallthru
      _
    // Predicated region
    $region18: #{span_model_forward.1} parent=1 // pred_check
      _
    $region19: #{span_model_forward.1} parent=1 // pred_check_branch
      %27 = sbr.rel (0) target = $region21
    $region20: #{span_model_forward.1} parent=1 // pred_region
      _
    $region21: #{span_model_forward.1} parent=1 // pred_fallthru
      _
    // Predicated region
    $region22: #{span_model_forward.1} parent=1 // pred_check
      _
    $region23: #{span_model_forward.1} parent=1 // pred_check_branch
      %29 = sbr.rel (0) target = $region25
    $region24: #{span_model_forward.1} parent=1 // pred_region
      _
    $region25: #{span_model_forward.1} parent=1 // pred_fallthru
      _
    // Predicated region
    $region26: #{span_model_forward.1} parent=1 // pred_check
      _
    $region27: #{span_model_forward.1} parent=1 // pred_check_branch
      %31 = sbr.rel (0) target = $region29
    $region28: #{span_model_forward.1} parent=1 // pred_region
      _
    $region29: #{span_model_forward.1} parent=1 // pred_fallthru
      _
    // Predicated region
    $region30: #{span_model_forward.1} parent=1 // pred_check
      _
    $region31: #{span_model_forward.1} parent=1 // pred_check_branch
      %33 = sbr.rel (0) target = $region33
    $region32: #{span_model_forward.1} parent=1 // pred_region
      _
    $region33: #{span_model_forward.1} parent=1 // pred_fallthru
      _
    // Predicated region
    $region34: #{span_model_forward.1} parent=1 // pred_check
      _
    $region35: #{span_model_forward.1} parent=1 // pred_check_branch
      %35 = sbr.rel (0) target = $region37
    $region36: #{span_model_forward.1} parent=1 // pred_region
      _
    $region37: #{span_model_forward.1} parent=1 // pred_fallthru
      _
    // Predicated region
    $region38: #{span_model_forward.1} parent=1 // pred_check
      _
    $region39: #{span_model_forward.1} parent=1 // pred_check_branch
      %37 = sbr.rel (0) target = $region41
    $region40: #{span_model_forward.1} parent=1 // pred_region
      _
    $region41: #{span_model_forward.1} parent=1 // pred_fallthru
      _
    %v39 = vld [vmem:[%s0] sm:$0xff]
    %v40 = vld [vmem:[%s0 + $0x8] sm:$0xff]
    %v43 = vrot.slane %v40, 7
    %vm44 = vcmask 1041409
    %v45 = vsel %vm44, %v43, %v39
    %vm47 = vcmask 254976
    %48 = vst.msk [vmem:[#allocation2] sm:$0x3] %vm47, %v45
    %v49 = vld [vmem:[%s1] sm:$0xff]
    %v50 = vld [vmem:[%s1 + $0x8] sm:$0xff]
    %v51 = vld [vmem:[%s1 + $0x10] sm:$0xff]
    %v52 = vld [vmem:[%s1 + $0x18] sm:$0xff]
    %v53 = vld [vmem:[%s1 + $0x20] sm:$0xff]
    %v54 = vld [vmem:[%s1 + $0x28] sm:$0xff]
    %v55 = vld [vmem:[%s1 + $0x30] sm:$0xf]
    %v56 = vlaneseq
    %v57 = vshrl.u32 %v56, 7
    %v58 = vsub.s32 0, %v57
    %v59 = vrot.slane %v49, %v58
    %61 = vbcast.lane.b32.xlu0 %v59, 256
    %v62 = vpop.permute.xlu0 %61
    %s64 = sor.u32 256, 8
    %65 = vbcast.lane.b32.xlu0 %v59, %s64
    %v66 = vpop.permute.xlu0 %65
    %v67 = vlaneseq
    %v68 = vshrl.u32 %v67, 7
    %v69 = vsub.s32 1, %v68
    %v70 = vrot.slane %v49, %v69
    %72 = vbcast.lane.b32.xlu0 %v70, 256
    %v73 = vpop.permute.xlu0 %72
    %s75 = sor.u32 256, 8
    %76 = vbcast.lane.b32.xlu0 %v70, %s75
    %v77 = vpop.permute.xlu0 %76
    %v78 = vlaneseq
    %v79 = vshrl.u32 %v78, 7
    %v80 = vsub.s32 2, %v79
    %v81 = vrot.slane %v49, %v80
    %83 = vbcast.lane.b32.xlu0 %v81, 256
    %v84 = vpop.permute.xlu0 %83
    %s86 = sor.u32 256, 8
    %87 = vbcast.lane.b32.xlu0 %v81, %s86
    %v88 = vpop.permute.xlu0 %87
    %v89 = vlaneseq
    %v90 = vshrl.u32 %v89, 7
    %v91 = vsub.s32 3, %v90
    %v92 = vrot.slane %v49, %v91
    %94 = vbcast.lane.b32.xlu0 %v92, 256
    %v95 = vpop.permute.xlu0 %94
    %s97 = sor.u32 256, 8
    %98 = vbcast.lane.b32.xlu0 %v92, %s97
    %v99 = vpop.permute.xlu0 %98
    %v100 = vlaneseq
    %v101 = vshrl.u32 %v100, 7
    %v102 = vsub.s32 4, %v101
    %v103 = vrot.slane %v49, %v102
    %105 = vbcast.lane.b32.xlu0 %v103, 256
    %v106 = vpop.permute.xlu0 %105
    %s108 = sor.u32 256, 8
    %109 = vbcast.lane.b32.xlu0 %v103, %s108
    %v110 = vpop.permute.xlu0 %109
    %v111 = vlaneseq
    %v112 = vshrl.u32 %v111, 7
    %v113 = vsub.s32 5, %v112
    %v114 = vrot.slane %v49, %v113
    %116 = vbcast.lane.b32.xlu0 %v114, 256
    %v117 = vpop.permute.xlu0 %116
    %s119 = sor.u32 256, 8
    %120 = vbcast.lane.b32.xlu0 %v114, %s119
    %v121 = vpop.permute.xlu0 %120
    %v122 = vlaneseq
    %v123 = vshrl.u32 %v122, 7
    %v124 = vsub.s32 6, %v123
    %v125 = vrot.slane %v49, %v124
    %127 = vbcast.lane.b32.xlu0 %v125, 256
    %v128 = vpop.permute.xlu0 %127
    %s130 = sor.u32 256, 8
    %131 = vbcast.lane.b32.xlu0 %v125, %s130
    %v132 = vpop.permute.xlu0 %131
    %v133 = vlaneseq
    %v134 = vshrl.u32 %v133, 7
    %v135 = vsub.s32 7, %v134
    %v136 = vrot.slane %v49, %v135
    %138 = vbcast.lane.b32.xlu0 %v136, 256
    %v139 = vpop.permute.xlu0 %138
    %s141 = sor.u32 256, 8
    %142 = vbcast.lane.b32.xlu0 %v136, %s141
    %v143 = vpop.permute.xlu0 %142
    %v144 = vlaneseq
    %v145 = vshrl.u32 %v144, 7
    %v146 = vsub.s32 0, %v145
    %v147 = vrot.slane %v50, %v146
    %149 = vbcast.lane.b32.xlu0 %v147, 256
    %v150 = vpop.permute.xlu0 %149
    %s152 = sor.u32 256, 8
    %153 = vbcast.lane.b32.xlu0 %v147, %s152
    %v154 = vpop.permute.xlu0 %153
    %v155 = vlaneseq
    %v156 = vshrl.u32 %v155, 7
    %v157 = vsub.s32 1, %v156
    %v158 = vrot.slane %v50, %v157
    %160 = vbcast.lane.b32.xlu0 %v158, 256
    %v161 = vpop.permute.xlu0 %160
    %s163 = sor.u32 256, 8
    %164 = vbcast.lane.b32.xlu0 %v158, %s163
    %v165 = vpop.permute.xlu0 %164
    %v166 = vlaneseq
    %v167 = vshrl.u32 %v166, 7
    %v168 = vsub.s32 2, %v167
    %v169 = vrot.slane %v50, %v168
    %171 = vbcast.lane.b32.xlu0 %v169, 256
    %v172 = vpop.permute.xlu0 %171
    %s174 = sor.u32 256, 8
    %175 = vbcast.lane.b32.xlu0 %v169, %s174
    %v176 = vpop.permute.xlu0 %175
    %v177 = vlaneseq
    %v178 = vshrl.u32 %v177, 7
    %v179 = vsub.s32 3, %v178
    %v180 = vrot.slane %v50, %v179
    %182 = vbcast.lane.b32.xlu0 %v180, 256
    %v183 = vpop.permute.xlu0 %182
    %s185 = sor.u32 256, 8
    %186 = vbcast.lane.b32.xlu0 %v180, %s185
    %v187 = vpop.permute.xlu0 %186
    %v188 = vlaneseq
    %v189 = vshrl.u32 %v188, 7
    %v190 = vsub.s32 4, %v189
    %v191 = vrot.slane %v50, %v190
    %193 = vbcast.lane.b32.xlu0 %v191, 256
    %v194 = vpop.permute.xlu0 %193
    %s196 = sor.u32 256, 8
    %197 = vbcast.lane.b32.xlu0 %v191, %s196
    %v198 = vpop.permute.xlu0 %197
    %v199 = vlaneseq
    %v200 = vshrl.u32 %v199, 7
    %v201 = vsub.s32 5, %v200
    %v202 = vrot.slane %v50, %v201
    %204 = vbcast.lane.b32.xlu0 %v202, 256
    %v205 = vpop.permute.xlu0 %204
    %s207 = sor.u32 256, 8
    %208 = vbcast.lane.b32.xlu0 %v202, %s207
    %v209 = vpop.permute.xlu0 %208
    %v210 = vlaneseq
    %v211 = vshrl.u32 %v210, 7
    %v212 = vsub.s32 6, %v211
    %v213 = vrot.slane %v50, %v212
    %215 = vbcast.lane.b32.xlu0 %v213, 256
    %v216 = vpop.permute.xlu0 %215
    %s218 = sor.u32 256, 8
    %219 = vbcast.lane.b32.xlu0 %v213, %s218
    %v220 = vpop.permute.xlu0 %219
    %v221 = vlaneseq
    %v222 = vshrl.u32 %v221, 7
    %v223 = vsub.s32 7, %v222
    %v224 = vrot.slane %v50, %v223
    %226 = vbcast.lane.b32.xlu0 %v224, 256
    %v227 = vpop.permute.xlu0 %226
    %s229 = sor.u32 256, 8
    %230 = vbcast.lane.b32.xlu0 %v224, %s229
    %v231 = vpop.permute.xlu0 %230
    %v232 = vlaneseq
    %v233 = vshrl.u32 %v232, 7
    %v234 = vsub.s32 0, %v233
    %v235 = vrot.slane %v51, %v234
    %237 = vbcast.lane.b32.xlu0 %v235, 256
    %v238 = vpop.permute.xlu0 %237
    %s240 = sor.u32 256, 8
    %241 = vbcast.lane.b32.xlu0 %v235, %s240
    %v242 = vpop.permute.xlu0 %241
    %v243 = vlaneseq
    %v244 = vshrl.u32 %v243, 7
    %v245 = vsub.s32 1, %v244
    %v246 = vrot.slane %v51, %v245
    %248 = vbcast.lane.b32.xlu0 %v246, 256
    %v249 = vpop.permute.xlu0 %248
    %s251 = sor.u32 256, 8
    %252 = vbcast.lane.b32.xlu0 %v246, %s251
    %v253 = vpop.permute.xlu0 %252
    %v254 = vlaneseq
    %v255 = vshrl.u32 %v254, 7
    %v256 = vsub.s32 2, %v255
    %v257 = vrot.slane %v51, %v256
    %259 = vbcast.lane.b32.xlu0 %v257, 256
    %v260 = vpop.permute.xlu0 %259
    %s262 = sor.u32 256, 8
    %263 = vbcast.lane.b32.xlu0 %v257, %s262
    %v264 = vpop.permute.xlu0 %263
    %v265 = vlaneseq
    %v266 = vshrl.u32 %v265, 7
    %v267 = vsub.s32 3, %v266
    %v268 = vrot.slane %v51, %v267
    %270 = vbcast.lane.b32.xlu0 %v268, 256
    %v271 = vpop.permute.xlu0 %270
    %s273 = sor.u32 256, 8
    %274 = vbcast.lane.b32.xlu0 %v268, %s273
    %v275 = vpop.permute.xlu0 %274
    %v276 = vlaneseq
    %v277 = vshrl.u32 %v276, 7
    %v278 = vsub.s32 4, %v277
    %v279 = vrot.slane %v51, %v278
    %281 = vbcast.lane.b32.xlu0 %v279, 256
    %v282 = vpop.permute.xlu0 %281
    %s284 = sor.u32 256, 8
    %285 = vbcast.lane.b32.xlu0 %v279, %s284
    %v286 = vpop.permute.xlu0 %285
    %v287 = vlaneseq
    %v288 = vshrl.u32 %v287, 7
    %v289 = vsub.s32 5, %v288
    %v290 = vrot.slane %v51, %v289
    %292 = vbcast.lane.b32.xlu0 %v290, 256
    %v293 = vpop.permute.xlu0 %292
    %s295 = sor.u32 256, 8
    %296 = vbcast.lane.b32.xlu0 %v290, %s295
    %v297 = vpop.permute.xlu0 %296
    %v298 = vlaneseq
    %v299 = vshrl.u32 %v298, 7
    %v300 = vsub.s32 6, %v299
    %v301 = vrot.slane %v51, %v300
    %303 = vbcast.lane.b32.xlu0 %v301, 256
    %v304 = vpop.permute.xlu0 %303
    %s306 = sor.u32 256, 8
    %307 = vbcast.lane.b32.xlu0 %v301, %s306
    %v308 = vpop.permute.xlu0 %307
    %v309 = vlaneseq
    %v310 = vshrl.u32 %v309, 7
    %v311 = vsub.s32 7, %v310
    %v312 = vrot.slane %v51, %v311
    %314 = vbcast.lane.b32.xlu0 %v312, 256
    %v315 = vpop.permute.xlu0 %314
    %s317 = sor.u32 256, 8
    %318 = vbcast.lane.b32.xlu0 %v312, %s317
    %v319 = vpop.permute.xlu0 %318
    %v320 = vlaneseq
    %v321 = vshrl.u32 %v320, 7
    %v322 = vsub.s32 0, %v321
    %v323 = vrot.slane %v52, %v322
    %325 = vbcast.lane.b32.xlu0 %v323, 256
    %v326 = vpop.permute.xlu0 %325
    %s328 = sor.u32 256, 8
    %329 = vbcast.lane.b32.xlu0 %v323, %s328
    %v330 = vpop.permute.xlu0 %329
    %v331 = vlaneseq
    %v332 = vshrl.u32 %v331, 7
    %v333 = vsub.s32 1, %v332
    %v334 = vrot.slane %v52, %v333
    %336 = vbcast.lane.b32.xlu0 %v334, 256
    %v337 = vpop.permute.xlu0 %336
    %s339 = sor.u32 256, 8
    %340 = vbcast.lane.b32.xlu0 %v334, %s339
    %v341 = vpop.permute.xlu0 %340
    %v342 = vlaneseq
    %v343 = vshrl.u32 %v342, 7
    %v344 = vsub.s32 2, %v343
    %v345 = vrot.slane %v52, %v344
    %347 = vbcast.lane.b32.xlu0 %v345, 256
    %v348 = vpop.permute.xlu0 %347
    %s350 = sor.u32 256, 8
    %351 = vbcast.lane.b32.xlu0 %v345, %s350
    %v352 = vpop.permute.xlu0 %351
    %v353 = vlaneseq
    %v354 = vshrl.u32 %v353, 7
    %v355 = vsub.s32 3, %v354
    %v356 = vrot.slane %v52, %v355
    %358 = vbcast.lane.b32.xlu0 %v356, 256
    %v359 = vpop.permute.xlu0 %358
    %s361 = sor.u32 256, 8
    %362 = vbcast.lane.b32.xlu0 %v356, %s361
    %v363 = vpop.permute.xlu0 %362
    %v364 = vlaneseq
    %v365 = vshrl.u32 %v364, 7
    %v366 = vsub.s32 4, %v365
    %v367 = vrot.slane %v52, %v366
    %369 = vbcast.lane.b32.xlu0 %v367, 256
    %v370 = vpop.permute.xlu0 %369
    %s372 = sor.u32 256, 8
    %373 = vbcast.lane.b32.xlu0 %v367, %s372
    %v374 = vpop.permute.xlu0 %373
    %v375 = vlaneseq
    %v376 = vshrl.u32 %v375, 7
    %v377 = vsub.s32 5, %v376
    %v378 = vrot.slane %v52, %v377
    %380 = vbcast.lane.b32.xlu0 %v378, 256
    %v381 = vpop.permute.xlu0 %380
    %s383 = sor.u32 256, 8
    %384 = vbcast.lane.b32.xlu0 %v378, %s383
    %v385 = vpop.permute.xlu0 %384
    %v386 = vlaneseq
    %v387 = vshrl.u32 %v386, 7
    %v388 = vsub.s32 6, %v387
    %v389 = vrot.slane %v52, %v388
    %391 = vbcast.lane.b32.xlu0 %v389, 256
    %v392 = vpop.permute.xlu0 %391
    %s394 = sor.u32 256, 8
    %395 = vbcast.lane.b32.xlu0 %v389, %s394
    %v396 = vpop.permute.xlu0 %395
    %v397 = vlaneseq
    %v398 = vshrl.u32 %v397, 7
    %v399 = vsub.s32 7, %v398
    %v400 = vrot.slane %v52, %v399
    %402 = vbcast.lane.b32.xlu0 %v400, 256
    %v403 = vpop.permute.xlu0 %402
    %s405 = sor.u32 256, 8
    %406 = vbcast.lane.b32.xlu0 %v400, %s405
    %v407 = vpop.permute.xlu0 %406
    %v408 = vlaneseq
    %v409 = vshrl.u32 %v408, 7
    %v410 = vsub.s32 0, %v409
    %v411 = vrot.slane %v53, %v410
    %413 = vbcast.lane.b32.xlu0 %v411, 256
    %v414 = vpop.permute.xlu0 %413
    %s416 = sor.u32 256, 8
    %417 = vbcast.lane.b32.xlu0 %v411, %s416
    %v418 = vpop.permute.xlu0 %417
    %v419 = vlaneseq
    %v420 = vshrl.u32 %v419, 7
    %v421 = vsub.s32 1, %v420
    %v422 = vrot.slane %v53, %v421
    %424 = vbcast.lane.b32.xlu0 %v422, 256
    %v425 = vpop.permute.xlu0 %424
    %s427 = sor.u32 256, 8
    %428 = vbcast.lane.b32.xlu0 %v422, %s427
    %v429 = vpop.permute.xlu0 %428
    %v430 = vlaneseq
    %v431 = vshrl.u32 %v430, 7
    %v432 = vsub.s32 2, %v431
    %v433 = vrot.slane %v53, %v432
    %435 = vbcast.lane.b32.xlu0 %v433, 256
    %v436 = vpop.permute.xlu0 %435
    %s438 = sor.u32 256, 8
    %439 = vbcast.lane.b32.xlu0 %v433, %s438
    %v440 = vpop.permute.xlu0 %439
    %v441 = vlaneseq
    %v442 = vshrl.u32 %v441, 7
    %v443 = vsub.s32 3, %v442
    %v444 = vrot.slane %v53, %v443
    %446 = vbcast.lane.b32.xlu0 %v444, 256
    %v447 = vpop.permute.xlu0 %446
    %s449 = sor.u32 256, 8
    %450 = vbcast.lane.b32.xlu0 %v444, %s449
    %v451 = vpop.permute.xlu0 %450
    %v452 = vlaneseq
    %v453 = vshrl.u32 %v452, 7
    %v454 = vsub.s32 4, %v453
    %v455 = vrot.slane %v53, %v454
    %457 = vbcast.lane.b32.xlu0 %v455, 256
    %v458 = vpop.permute.xlu0 %457
    %s460 = sor.u32 256, 8
    %461 = vbcast.lane.b32.xlu0 %v455, %s460
    %v462 = vpop.permute.xlu0 %461
    %v463 = vlaneseq
    %v464 = vshrl.u32 %v463, 7
    %v465 = vsub.s32 5, %v464
    %v466 = vrot.slane %v53, %v465
    %468 = vbcast.lane.b32.xlu0 %v466, 256
    %v469 = vpop.permute.xlu0 %468
    %s471 = sor.u32 256, 8
    %472 = vbcast.lane.b32.xlu0 %v466, %s471
    %v473 = vpop.permute.xlu0 %472
    %v474 = vlaneseq
    %v475 = vshrl.u32 %v474, 7
    %v476 = vsub.s32 6, %v475
    %v477 = vrot.slane %v53, %v476
    %479 = vbcast.lane.b32.xlu0 %v477, 256
    %v480 = vpop.permute.xlu0 %479
    %s482 = sor.u32 256, 8
    %483 = vbcast.lane.b32.xlu0 %v477, %s482
    %v484 = vpop.permute.xlu0 %483
    %v485 = vlaneseq
    %v486 = vshrl.u32 %v485, 7
    %v487 = vsub.s32 7, %v486
    %v488 = vrot.slane %v53, %v487
    %490 = vbcast.lane.b32.xlu0 %v488, 256
    %v491 = vpop.permute.xlu0 %490
    %s493 = sor.u32 256, 8
    %494 = vbcast.lane.b32.xlu0 %v488, %s493
    %v495 = vpop.permute.xlu0 %494
    %v496 = vlaneseq
    %v497 = vshrl.u32 %v496, 7
    %v498 = vsub.s32 0, %v497
    %v499 = vrot.slane %v54, %v498
    %501 = vbcast.lane.b32.xlu0 %v499, 256
    %v502 = vpop.permute.xlu0 %501
    %s504 = sor.u32 256, 8
    %505 = vbcast.lane.b32.xlu0 %v499, %s504
    %v506 = vpop.permute.xlu0 %505
    %v507 = vlaneseq
    %v508 = vshrl.u32 %v507, 7
    %v509 = vsub.s32 1, %v508
    %v510 = vrot.slane %v54, %v509
    %512 = vbcast.lane.b32.xlu0 %v510, 256
    %v513 = vpop.permute.xlu0 %512
    %s515 = sor.u32 256, 8
    %516 = vbcast.lane.b32.xlu0 %v510, %s515
    %v517 = vpop.permute.xlu0 %516
    %v518 = vlaneseq
    %v519 = vshrl.u32 %v518, 7
    %v520 = vsub.s32 2, %v519
    %v521 = vrot.slane %v54, %v520
    %523 = vbcast.lane.b32.xlu0 %v521, 256
    %v524 = vpop.permute.xlu0 %523
    %s526 = sor.u32 256, 8
    %527 = vbcast.lane.b32.xlu0 %v521, %s526
    %v528 = vpop.permute.xlu0 %527
    %v529 = vlaneseq
    %v530 = vshrl.u32 %v529, 7
    %v531 = vsub.s32 3, %v530
    %v532 = vrot.slane %v54, %v531
    %534 = vbcast.lane.b32.xlu0 %v532, 256
    %v535 = vpop.permute.xlu0 %534
    %s537 = sor.u32 256, 8
    %538 = vbcast.lane.b32.xlu0 %v532, %s537
    %v539 = vpop.permute.xlu0 %538
    %v540 = vlaneseq
    %v541 = vshrl.u32 %v540, 7
    %v542 = vsub.s32 4, %v541
    %v543 = vrot.slane %v54, %v542
    %545 = vbcast.lane.b32.xlu0 %v543, 256
    %v546 = vpop.permute.xlu0 %545
    %s548 = sor.u32 256, 8
    %549 = vbcast.lane.b32.xlu0 %v543, %s548
    %v550 = vpop.permute.xlu0 %549
    %v551 = vlaneseq
    %v552 = vshrl.u32 %v551, 7
    %v553 = vsub.s32 5, %v552
    %v554 = vrot.slane %v54, %v553
    %556 = vbcast.lane.b32.xlu0 %v554, 256
    %v557 = vpop.permute.xlu0 %556
    %s559 = sor.u32 256, 8
    %560 = vbcast.lane.b32.xlu0 %v554, %s559
    %v561 = vpop.permute.xlu0 %560
    %v562 = vlaneseq
    %v563 = vshrl.u32 %v562, 7
    %v564 = vsub.s32 6, %v563
    %v565 = vrot.slane %v54, %v564
    %567 = vbcast.lane.b32.xlu0 %v565, 256
    %v568 = vpop.permute.xlu0 %567
    %s570 = sor.u32 256, 8
    %571 = vbcast.lane.b32.xlu0 %v565, %s570
    %v572 = vpop.permute.xlu0 %571
    %v573 = vlaneseq
    %v574 = vshrl.u32 %v573, 7
    %v575 = vsub.s32 7, %v574
    %v576 = vrot.slane %v54, %v575
    %578 = vbcast.lane.b32.xlu0 %v576, 256
    %v579 = vpop.permute.xlu0 %578
    %s581 = sor.u32 256, 8
    %582 = vbcast.lane.b32.xlu0 %v576, %s581
    %v583 = vpop.permute.xlu0 %582
    %v584 = vlaneseq
    %v585 = vshrl.u32 %v584, 7
    %v586 = vsub.s32 0, %v585
    %v587 = vrot.slane %v55, %v586
    %589 = vbcast.lane.b32.xlu0 %v587, 256
    %v590 = vpop.permute.xlu0 %589
    %s592 = sor.u32 256, 8
    %593 = vbcast.lane.b32.xlu0 %v587, %s592
    %v594 = vpop.permute.xlu0 %593
    %v595 = vlaneseq
    %v596 = vshrl.u32 %v595, 7
    %v597 = vsub.s32 1, %v596
    %v598 = vrot.slane %v55, %v597
    %600 = vbcast.lane.b32.xlu0 %v598, 256
    %v601 = vpop.permute.xlu0 %600
    %s603 = sor.u32 256, 8
    %604 = vbcast.lane.b32.xlu0 %v598, %s603
    %v605 = vpop.permute.xlu0 %604
    %v606 = vlaneseq
    %v607 = vshrl.u32 %v606, 7
    %v608 = vsub.s32 2, %v607
    %v609 = vrot.slane %v55, %v608
    %611 = vbcast.lane.b32.xlu0 %v609, 256
    %v612 = vpop.permute.xlu0 %611
    %s614 = sor.u32 256, 8
    %615 = vbcast.lane.b32.xlu0 %v609, %s614
    %v616 = vpop.permute.xlu0 %615
    %v617 = vlaneseq
    %v618 = vshrl.u32 %v617, 7
    %v619 = vsub.s32 3, %v618
    %v620 = vrot.slane %v55, %v619
    %622 = vbcast.lane.b32.xlu0 %v620, 256
    %v623 = vpop.permute.xlu0 %622
    %s625 = sor.u32 256, 8
    %626 = vbcast.lane.b32.xlu0 %v620, %s625
    %v627 = vpop.permute.xlu0 %626
    %v628 = vadd.f32 %v39, %v62
    %v629 = vadd.f32 %v40, %v66
    %v630 = vadd.f32 %v39, %v73
    %v631 = vadd.f32 %v40, %v77
    %v632 = vadd.f32 %v39, %v84
    %v633 = vadd.f32 %v40, %v88
    %v634 = vadd.f32 %v39, %v95
    %v635 = vadd.f32 %v40, %v99
    %v636 = vadd.f32 %v39, %v106
    %v637 = vadd.f32 %v40, %v110
    %v638 = vadd.f32 %v39, %v117
    %v639 = vadd.f32 %v40, %v121
    %v640 = vadd.f32 %v39, %v128
    %v641 = vadd.f32 %v40, %v132
    %v642 = vadd.f32 %v39, %v139
    %v643 = vadd.f32 %v40, %v143
    %v644 = vadd.f32 %v39, %v150
    %v645 = vadd.f32 %v40, %v154
    %v646 = vadd.f32 %v39, %v161
    %v647 = vadd.f32 %v40, %v165
    %v648 = vadd.f32 %v39, %v172
    %v649 = vadd.f32 %v40, %v176
    %v650 = vadd.f32 %v39, %v183
    %v651 = vadd.f32 %v40, %v187
    %v652 = vadd.f32 %v39, %v194
    %v653 = vadd.f32 %v40, %v198
    %v654 = vadd.f32 %v39, %v205
    %v655 = vadd.f32 %v40, %v209
    %v656 = vadd.f32 %v39, %v216
    %v657 = vadd.f32 %v40, %v220
    %v658 = vadd.f32 %v39, %v227
    %v659 = vadd.f32 %v40, %v231
    %v660 = vadd.f32 %v39, %v238
    %v661 = vadd.f32 %v40, %v242
    %v662 = vadd.f32 %v39, %v249
    %v663 = vadd.f32 %v40, %v253
    %v664 = vadd.f32 %v39, %v260
    %v665 = vadd.f32 %v40, %v264
    %v666 = vadd.f32 %v39, %v271
    %v667 = vadd.f32 %v40, %v275
    %v668 = vadd.f32 %v39, %v282
    %v669 = vadd.f32 %v40, %v286
    %v670 = vadd.f32 %v39, %v293
    %v671 = vadd.f32 %v40, %v297
    %v672 = vadd.f32 %v39, %v304
    %v673 = vadd.f32 %v40, %v308
    %v674 = vadd.f32 %v39, %v315
    %v675 = vadd.f32 %v40, %v319
    %v676 = vadd.f32 %v39, %v326
    %v677 = vadd.f32 %v40, %v330
    %v678 = vadd.f32 %v39, %v337
    %v679 = vadd.f32 %v40, %v341
    %v680 = vadd.f32 %v39, %v348
    %v681 = vadd.f32 %v40, %v352
    %v682 = vadd.f32 %v39, %v359
    %v683 = vadd.f32 %v40, %v363
    %v684 = vadd.f32 %v39, %v370
    %v685 = vadd.f32 %v40, %v374
    %v686 = vadd.f32 %v39, %v381
    %v687 = vadd.f32 %v40, %v385
    %v688 = vadd.f32 %v39, %v392
    %v689 = vadd.f32 %v40, %v396
    %v690 = vadd.f32 %v39, %v403
    %v691 = vadd.f32 %v40, %v407
    %v692 = vadd.f32 %v39, %v414
    %v693 = vadd.f32 %v40, %v418
    %v694 = vadd.f32 %v39, %v425
    %v695 = vadd.f32 %v40, %v429
    %v696 = vadd.f32 %v39, %v436
    %v697 = vadd.f32 %v40, %v440
    %v698 = vadd.f32 %v39, %v447
    %v699 = vadd.f32 %v40, %v451
    %v700 = vadd.f32 %v39, %v458
    %v701 = vadd.f32 %v40, %v462
    %v702 = vadd.f32 %v39, %v469
    %v703 = vadd.f32 %v40, %v473
    %v704 = vadd.f32 %v39, %v480
    %v705 = vadd.f32 %v40, %v484
    %v706 = vadd.f32 %v39, %v491
    %v707 = vadd.f32 %v40, %v495
    %v708 = vadd.f32 %v39, %v502
    %v709 = vadd.f32 %v40, %v506
    %v710 = vadd.f32 %v39, %v513
    %v711 = vadd.f32 %v40, %v517
    %v712 = vadd.f32 %v39, %v524
    %v713 = vadd.f32 %v40, %v528
    %v714 = vadd.f32 %v39, %v535
    %v715 = vadd.f32 %v40, %v539
    %v716 = vadd.f32 %v39, %v546
    %v717 = vadd.f32 %v40, %v550
    %v718 = vadd.f32 %v39, %v557
    %v719 = vadd.f32 %v40, %v561
    %v720 = vadd.f32 %v39, %v568
    %v721 = vadd.f32 %v40, %v572
    %v722 = vadd.f32 %v39, %v579
    %v723 = vadd.f32 %v40, %v583
    %v724 = vadd.f32 %v39, %v590
    %v725 = vadd.f32 %v40, %v594
    %v726 = vadd.f32 %v39, %v601
    %v727 = vadd.f32 %v40, %v605
    %v728 = vadd.f32 %v39, %v612
    %v729 = vadd.f32 %v40, %v616
    %v730 = vadd.f32 %v39, %v623
    %v731 = vadd.f32 %v40, %v627
    %vm732 = vcmask 261120
    %v733 = vsel %vm732, %v628, -inf
    %v734 = vsel %vm732, %v629, -inf
    %v735 = vmax.f32 %v733, %v734
    %v736 = vrot.slane %v735, 4
    %v737 = vmax.f32 %v735, %v736
    %v738 = vrot.slane %v737, 2
    %v739 = vmax.f32 %v737, %v738
    %v740 = vrot.slane %v739, 1
    %v741 = vmax.f32 %v739, %v740
    %v742 = vsel %vm732, %v630, -inf
    %v743 = vsel %vm732, %v631, -inf
    %v744 = vmax.f32 %v742, %v743
    %v745 = vrot.slane %v744, 4
    %v746 = vmax.f32 %v744, %v745
    %v747 = vrot.slane %v746, 2
    %v748 = vmax.f32 %v746, %v747
    %v749 = vrot.slane %v748, 1
    %v750 = vmax.f32 %v748, %v749
    %v751 = vsel %vm732, %v632, -inf
    %v752 = vsel %vm732, %v633, -inf
    %v753 = vmax.f32 %v751, %v752
    %v754 = vrot.slane %v753, 4
    %v755 = vmax.f32 %v753, %v754
    %v756 = vrot.slane %v755, 2
    %v757 = vmax.f32 %v755, %v756
    %v758 = vrot.slane %v757, 1
    %v759 = vmax.f32 %v757, %v758
    %v760 = vsel %vm732, %v634, -inf
    %v761 = vsel %vm732, %v635, -inf
    %v762 = vmax.f32 %v760, %v761
    %v763 = vrot.slane %v762, 4
    %v764 = vmax.f32 %v762, %v763
    %v765 = vrot.slane %v764, 2
    %v766 = vmax.f32 %v764, %v765
    %v767 = vrot.slane %v766, 1
    %v768 = vmax.f32 %v766, %v767
    %v769 = vsel %vm732, %v636, -inf
    %v770 = vsel %vm732, %v637, -inf
    %v771 = vmax.f32 %v769, %v770
    %v772 = vrot.slane %v771, 4
    %v773 = vmax.f32 %v771, %v772
    %v774 = vrot.slane %v773, 2
    %v775 = vmax.f32 %v773, %v774
    %v776 = vrot.slane %v775, 1
    %v777 = vmax.f32 %v775, %v776
    %v778 = vsel %vm732, %v638, -inf
    %v779 = vsel %vm732, %v639, -inf
    %v780 = vmax.f32 %v778, %v779
    %v781 = vrot.slane %v780, 4
    %v782 = vmax.f32 %v780, %v781
    %v783 = vrot.slane %v782, 2
    %v784 = vmax.f32 %v782, %v783
    %v785 = vrot.slane %v784, 1
    %v786 = vmax.f32 %v784, %v785
    %v787 = vsel %vm732, %v640, -inf
    %v788 = vsel %vm732, %v641, -inf
    %v789 = vmax.f32 %v787, %v788
    %v790 = vrot.slane %v789, 4
    %v791 = vmax.f32 %v789, %v790
    %v792 = vrot.slane %v791, 2
    %v793 = vmax.f32 %v791, %v792
    %v794 = vrot.slane %v793, 1
    %v795 = vmax.f32 %v793, %v794
    %v796 = vsel %vm732, %v642, -inf
    %v797 = vsel %vm732, %v643, -inf
    %v798 = vmax.f32 %v796, %v797
    %v799 = vrot.slane %v798, 4
    %v800 = vmax.f32 %v798, %v799
    %v801 = vrot.slane %v800, 2
    %v802 = vmax.f32 %v800, %v801
    %v803 = vrot.slane %v802, 1
    %v804 = vmax.f32 %v802, %v803
    %v805 = vsel %vm732, %v644, -inf
    %v806 = vsel %vm732, %v645, -inf
    %v807 = vmax.f32 %v805, %v806
    %v808 = vrot.slane %v807, 4
    %v809 = vmax.f32 %v807, %v808
    %v810 = vrot.slane %v809, 2
    %v811 = vmax.f32 %v809, %v810
    %v812 = vrot.slane %v811, 1
    %v813 = vmax.f32 %v811, %v812
    %v814 = vsel %vm732, %v646, -inf
    %v815 = vsel %vm732, %v647, -inf
    %v816 = vmax.f32 %v814, %v815
    %v817 = vrot.slane %v816, 4
    %v818 = vmax.f32 %v816, %v817
    %v819 = vrot.slane %v818, 2
    %v820 = vmax.f32 %v818, %v819
    %v821 = vrot.slane %v820, 1
    %v822 = vmax.f32 %v820, %v821
    %v823 = vsel %vm732, %v648, -inf
    %v824 = vsel %vm732, %v649, -inf
    %v825 = vmax.f32 %v823, %v824
    %v826 = vrot.slane %v825, 4
    %v827 = vmax.f32 %v825, %v826
    %v828 = vrot.slane %v827, 2
    %v829 = vmax.f32 %v827, %v828
    %v830 = vrot.slane %v829, 1
    %v831 = vmax.f32 %v829, %v830
    %v832 = vsel %vm732, %v650, -inf
    %v833 = vsel %vm732, %v651, -inf
    %v834 = vmax.f32 %v832, %v833
    %v835 = vrot.slane %v834, 4
    %v836 = vmax.f32 %v834, %v835
    %v837 = vrot.slane %v836, 2
    %v838 = vmax.f32 %v836, %v837
    %v839 = vrot.slane %v838, 1
    %v840 = vmax.f32 %v838, %v839
    %v841 = vsel %vm732, %v652, -inf
    %v842 = vsel %vm732, %v653, -inf
    %v843 = vmax.f32 %v841, %v842
    %v844 = vrot.slane %v843, 4
    %v845 = vmax.f32 %v843, %v844
    %v846 = vrot.slane %v845, 2
    %v847 = vmax.f32 %v845, %v846
    %v848 = vrot.slane %v847, 1
    %v849 = vmax.f32 %v847, %v848
    %v850 = vsel %vm732, %v654, -inf
    %v851 = vsel %vm732, %v655, -inf
    %v852 = vmax.f32 %v850, %v851
    %v853 = vrot.slane %v852, 4
    %v854 = vmax.f32 %v852, %v853
    %v855 = vrot.slane %v854, 2
    %v856 = vmax.f32 %v854, %v855
    %v857 = vrot.slane %v856, 1
    %v858 = vmax.f32 %v856, %v857
    %v859 = vsel %vm732, %v656, -inf
    %v860 = vsel %vm732, %v657, -inf
    %v861 = vmax.f32 %v859, %v860
    %v862 = vrot.slane %v861, 4
    %v863 = vmax.f32 %v861, %v862
    %v864 = vrot.slane %v863, 2
    %v865 = vmax.f32 %v863, %v864
    %v866 = vrot.slane %v865, 1
    %v867 = vmax.f32 %v865, %v866
    %v868 = vsel %vm732, %v658, -inf
    %v869 = vsel %vm732, %v659, -inf
    %v870 = vmax.f32 %v868, %v869
    %v871 = vrot.slane %v870, 4
    %v872 = vmax.f32 %v870, %v871
    %v873 = vrot.slane %v872, 2
    %v874 = vmax.f32 %v872, %v873
    %v875 = vrot.slane %v874, 1
    %v876 = vmax.f32 %v874, %v875
    %v877 = vsel %vm732, %v660, -inf
    %v878 = vsel %vm732, %v661, -inf
    %v879 = vmax.f32 %v877, %v878
    %v880 = vrot.slane %v879, 4
    %v881 = vmax.f32 %v879, %v880
    %v882 = vrot.slane %v881, 2
    %v883 = vmax.f32 %v881, %v882
    %v884 = vrot.slane %v883, 1
    %v885 = vmax.f32 %v883, %v884
    %v886 = vsel %vm732, %v662, -inf
    %v887 = vsel %vm732, %v663, -inf
    %v888 = vmax.f32 %v886, %v887
    %v889 = vrot.slane %v888, 4
    %v890 = vmax.f32 %v888, %v889
    %v891 = vrot.slane %v890, 2
    %v892 = vmax.f32 %v890, %v891
    %v893 = vrot.slane %v892, 1
    %v894 = vmax.f32 %v892, %v893
    %v895 = vsel %vm732, %v664, -inf
    %v896 = vsel %vm732, %v665, -inf
    %v897 = vmax.f32 %v895, %v896
    %v898 = vrot.slane %v897, 4
    %v899 = vmax.f32 %v897, %v898
    %v900 = vrot.slane %v899, 2
    %v901 = vmax.f32 %v899, %v900
    %v902 = vrot.slane %v901, 1
    %v903 = vmax.f32 %v901, %v902
    %v904 = vsel %vm732, %v666, -inf
    %v905 = vsel %vm732, %v667, -inf
    %v906 = vmax.f32 %v904, %v905
    %v907 = vrot.slane %v906, 4
    %v908 = vmax.f32 %v906, %v907
    %v909 = vrot.slane %v908, 2
    %v910 = vmax.f32 %v908, %v909
    %v911 = vrot.slane %v910, 1
    %v912 = vmax.f32 %v910, %v911
    %v913 = vsel %vm732, %v668, -inf
    %v914 = vsel %vm732, %v669, -inf
    %v915 = vmax.f32 %v913, %v914
    %v916 = vrot.slane %v915, 4
    %v917 = vmax.f32 %v915, %v916
    %v918 = vrot.slane %v917, 2
    %v919 = vmax.f32 %v917, %v918
    %v920 = vrot.slane %v919, 1
    %v921 = vmax.f32 %v919, %v920
    %v922 = vsel %vm732, %v670, -inf
    %v923 = vsel %vm732, %v671, -inf
    %v924 = vmax.f32 %v922, %v923
    %v925 = vrot.slane %v924, 4
    %v926 = vmax.f32 %v924, %v925
    %v927 = vrot.slane %v926, 2
    %v928 = vmax.f32 %v926, %v927
    %v929 = vrot.slane %v928, 1
    %v930 = vmax.f32 %v928, %v929
    %v931 = vsel %vm732, %v672, -inf
    %v932 = vsel %vm732, %v673, -inf
    %v933 = vmax.f32 %v931, %v932
    %v934 = vrot.slane %v933, 4
    %v935 = vmax.f32 %v933, %v934
    %v936 = vrot.slane %v935, 2
    %v937 = vmax.f32 %v935, %v936
    %v938 = vrot.slane %v937, 1
    %v939 = vmax.f32 %v937, %v938
    %v940 = vsel %vm732, %v674, -inf
    %v941 = vsel %vm732, %v675, -inf
    %v942 = vmax.f32 %v940, %v941
    %v943 = vrot.slane %v942, 4
    %v944 = vmax.f32 %v942, %v943
    %v945 = vrot.slane %v944, 2
    %v946 = vmax.f32 %v944, %v945
    %v947 = vrot.slane %v946, 1
    %v948 = vmax.f32 %v946, %v947
    %v949 = vsel %vm732, %v676, -inf
    %v950 = vsel %vm732, %v677, -inf
    %v951 = vmax.f32 %v949, %v950
    %v952 = vrot.slane %v951, 4
    %v953 = vmax.f32 %v951, %v952
    %v954 = vrot.slane %v953, 2
    %v955 = vmax.f32 %v953, %v954
    %v956 = vrot.slane %v955, 1
    %v957 = vmax.f32 %v955, %v956
    %v958 = vsel %vm732, %v678, -inf
    %v959 = vsel %vm732, %v679, -inf
    %v960 = vmax.f32 %v958, %v959
    %v961 = vrot.slane %v960, 4
    %v962 = vmax.f32 %v960, %v961
    %v963 = vrot.slane %v962, 2
    %v964 = vmax.f32 %v962, %v963
    %v965 = vrot.slane %v964, 1
    %v966 = vmax.f32 %v964, %v965
    %v967 = vsel %vm732, %v680, -inf
    %v968 = vsel %vm732, %v681, -inf
    %v969 = vmax.f32 %v967, %v968
    %v970 = vrot.slane %v969, 4
    %v971 = vmax.f32 %v969, %v970
    %v972 = vrot.slane %v971, 2
    %v973 = vmax.f32 %v971, %v972
    %v974 = vrot.slane %v973, 1
    %v975 = vmax.f32 %v973, %v974
    %v976 = vsel %vm732, %v682, -inf
    %v977 = vsel %vm732, %v683, -inf
    %v978 = vmax.f32 %v976, %v977
    %v979 = vrot.slane %v978, 4
    %v980 = vmax.f32 %v978, %v979
    %v981 = vrot.slane %v980, 2
    %v982 = vmax.f32 %v980, %v981
    %v983 = vrot.slane %v982, 1
    %v984 = vmax.f32 %v982, %v983
    %v985 = vsel %vm732, %v684, -inf
    %v986 = vsel %vm732, %v685, -inf
    %v987 = vmax.f32 %v985, %v986
    %v988 = vrot.slane %v987, 4
    %v989 = vmax.f32 %v987, %v988
    %v990 = vrot.slane %v989, 2
    %v991 = vmax.f32 %v989, %v990
    %v992 = vrot.slane %v991, 1
    %v993 = vmax.f32 %v991, %v992
    %v994 = vsel %vm732, %v686, -inf
    %v995 = vsel %vm732, %v687, -inf
    %v996 = vmax.f32 %v994, %v995
    %v997 = vrot.slane %v996, 4
    %v998 = vmax.f32 %v996, %v997
    %v999 = vrot.slane %v998, 2
    %v1000 = vmax.f32 %v998, %v999
    %v1001 = vrot.slane %v1000, 1
    %v1002 = vmax.f32 %v1000, %v1001
    %v1003 = vsel %vm732, %v688, -inf
    %v1004 = vsel %vm732, %v689, -inf
    %v1005 = vmax.f32 %v1003, %v1004
    %v1006 = vrot.slane %v1005, 4
    %v1007 = vmax.f32 %v1005, %v1006
    %v1008 = vrot.slane %v1007, 2
    %v1009 = vmax.f32 %v1007, %v1008
    %v1010 = vrot.slane %v1009, 1
    %v1011 = vmax.f32 %v1009, %v1010
    %v1012 = vsel %vm732, %v690, -inf
    %v1013 = vsel %vm732, %v691, -inf
    %v1014 = vmax.f32 %v1012, %v1013
    %v1015 = vrot.slane %v1014, 4
    %v1016 = vmax.f32 %v1014, %v1015
    %v1017 = vrot.slane %v1016, 2
    %v1018 = vmax.f32 %v1016, %v1017
    %v1019 = vrot.slane %v1018, 1
    %v1020 = vmax.f32 %v1018, %v1019
    %v1021 = vsel %vm732, %v692, -inf
    %v1022 = vsel %vm732, %v693, -inf
    %v1023 = vmax.f32 %v1021, %v1022
    %v1024 = vrot.slane %v1023, 4
    %v1025 = vmax.f32 %v1023, %v1024
    %v1026 = vrot.slane %v1025, 2
    %v1027 = vmax.f32 %v1025, %v1026
    %v1028 = vrot.slane %v1027, 1
    %v1029 = vmax.f32 %v1027, %v1028
    %v1030 = vsel %vm732, %v694, -inf
    %v1031 = vsel %vm732, %v695, -inf
    %v1032 = vmax.f32 %v1030, %v1031
    %v1033 = vrot.slane %v1032, 4
    %v1034 = vmax.f32 %v1032, %v1033
    %v1035 = vrot.slane %v1034, 2
    %v1036 = vmax.f32 %v1034, %v1035
    %v1037 = vrot.slane %v1036, 1
    %v1038 = vmax.f32 %v1036, %v1037
    %v1039 = vsel %vm732, %v696, -inf
    %v1040 = vsel %vm732, %v697, -inf
    %v1041 = vmax.f32 %v1039, %v1040
    %v1042 = vrot.slane %v1041, 4
    %v1043 = vmax.f32 %v1041, %v1042
    %v1044 = vrot.slane %v1043, 2
    %v1045 = vmax.f32 %v1043, %v1044
    %v1046 = vrot.slane %v1045, 1
    %v1047 = vmax.f32 %v1045, %v1046
    %v1048 = vsel %vm732, %v698, -inf
    %v1049 = vsel %vm732, %v699, -inf
    %v1050 = vmax.f32 %v1048, %v1049
    %v1051 = vrot.slane %v1050, 4
    %v1052 = vmax.f32 %v1050, %v1051
    %v1053 = vrot.slane %v1052, 2
    %v1054 = vmax.f32 %v1052, %v1053
    %v1055 = vrot.slane %v1054, 1
    %v1056 = vmax.f32 %v1054, %v1055
    %v1057 = vsel %vm732, %v700, -inf
    %v1058 = vsel %vm732, %v701, -inf
    %v1059 = vmax.f32 %v1057, %v1058
    %v1060 = vrot.slane %v1059, 4
    %v1061 = vmax.f32 %v1059, %v1060
    %v1062 = vrot.slane %v1061, 2
    %v1063 = vmax.f32 %v1061, %v1062
    %v1064 = vrot.slane %v1063, 1
    %v1065 = vmax.f32 %v1063, %v1064
    %v1066 = vsel %vm732, %v702, -inf
    %v1067 = vsel %vm732, %v703, -inf
    %v1068 = vmax.f32 %v1066, %v1067
    %v1069 = vrot.slane %v1068, 4
    %v1070 = vmax.f32 %v1068, %v1069
    %v1071 = vrot.slane %v1070, 2
    %v1072 = vmax.f32 %v1070, %v1071
    %v1073 = vrot.slane %v1072, 1
    %v1074 = vmax.f32 %v1072, %v1073
    %v1075 = vsel %vm732, %v704, -inf
    %v1076 = vsel %vm732, %v705, -inf
    %v1077 = vmax.f32 %v1075, %v1076
    %v1078 = vrot.slane %v1077, 4
    %v1079 = vmax.f32 %v1077, %v1078
    %v1080 = vrot.slane %v1079, 2
    %v1081 = vmax.f32 %v1079, %v1080
    %v1082 = vrot.slane %v1081, 1
    %v1083 = vmax.f32 %v1081, %v1082
    %v1084 = vsel %vm732, %v706, -inf
    %v1085 = vsel %vm732, %v707, -inf
    %v1086 = vmax.f32 %v1084, %v1085
    %v1087 = vrot.slane %v1086, 4
    %v1088 = vmax.f32 %v1086, %v1087
    %v1089 = vrot.slane %v1088, 2
    %v1090 = vmax.f32 %v1088, %v1089
    %v1091 = vrot.slane %v1090, 1
    %v1092 = vmax.f32 %v1090, %v1091
    %v1093 = vsel %vm732, %v708, -inf
    %v1094 = vsel %vm732, %v709, -inf
    %v1095 = vmax.f32 %v1093, %v1094
    %v1096 = vrot.slane %v1095, 4
    %v1097 = vmax.f32 %v1095, %v1096
    %v1098 = vrot.slane %v1097, 2
    %v1099 = vmax.f32 %v1097, %v1098
    %v1100 = vrot.slane %v1099, 1
    %v1101 = vmax.f32 %v1099, %v1100
    %v1102 = vsel %vm732, %v710, -inf
    %v1103 = vsel %vm732, %v711, -inf
    %v1104 = vmax.f32 %v1102, %v1103
    %v1105 = vrot.slane %v1104, 4
    %v1106 = vmax.f32 %v1104, %v1105
    %v1107 = vrot.slane %v1106, 2
    %v1108 = vmax.f32 %v1106, %v1107
    %v1109 = vrot.slane %v1108, 1
    %v1110 = vmax.f32 %v1108, %v1109
    %v1111 = vsel %vm732, %v712, -inf
    %v1112 = vsel %vm732, %v713, -inf
    %v1113 = vmax.f32 %v1111, %v1112
    %v1114 = vrot.slane %v1113, 4
    %v1115 = vmax.f32 %v1113, %v1114
    %v1116 = vrot.slane %v1115, 2
    %v1117 = vmax.f32 %v1115, %v1116
    %v1118 = vrot.slane %v1117, 1
    %v1119 = vmax.f32 %v1117, %v1118
    %v1120 = vsel %vm732, %v714, -inf
    %v1121 = vsel %vm732, %v715, -inf
    %v1122 = vmax.f32 %v1120, %v1121
    %v1123 = vrot.slane %v1122, 4
    %v1124 = vmax.f32 %v1122, %v1123
    %v1125 = vrot.slane %v1124, 2
    %v1126 = vmax.f32 %v1124, %v1125
    %v1127 = vrot.slane %v1126, 1
    %v1128 = vmax.f32 %v1126, %v1127
    %v1129 = vsel %vm732, %v716, -inf
    %v1130 = vsel %vm732, %v717, -inf
    %v1131 = vmax.f32 %v1129, %v1130
    %v1132 = vrot.slane %v1131, 4
    %v1133 = vmax.f32 %v1131, %v1132
    %v1134 = vrot.slane %v1133, 2
    %v1135 = vmax.f32 %v1133, %v1134
    %v1136 = vrot.slane %v1135, 1
    %v1137 = vmax.f32 %v1135, %v1136
    %v1138 = vsel %vm732, %v718, -inf
    %v1139 = vsel %vm732, %v719, -inf
    %v1140 = vmax.f32 %v1138, %v1139
    %v1141 = vrot.slane %v1140, 4
    %v1142 = vmax.f32 %v1140, %v1141
    %v1143 = vrot.slane %v1142, 2
    %v1144 = vmax.f32 %v1142, %v1143
    %v1145 = vrot.slane %v1144, 1
    %v1146 = vmax.f32 %v1144, %v1145
    %v1147 = vsel %vm732, %v720, -inf
    %v1148 = vsel %vm732, %v721, -inf
    %v1149 = vmax.f32 %v1147, %v1148
    %v1150 = vrot.slane %v1149, 4
    %v1151 = vmax.f32 %v1149, %v1150
    %v1152 = vrot.slane %v1151, 2
    %v1153 = vmax.f32 %v1151, %v1152
    %v1154 = vrot.slane %v1153, 1
    %v1155 = vmax.f32 %v1153, %v1154
    %v1156 = vsel %vm732, %v722, -inf
    %v1157 = vsel %vm732, %v723, -inf
    %v1158 = vmax.f32 %v1156, %v1157
    %v1159 = vrot.slane %v1158, 4
    %v1160 = vmax.f32 %v1158, %v1159
    %v1161 = vrot.slane %v1160, 2
    %v1162 = vmax.f32 %v1160, %v1161
    %v1163 = vrot.slane %v1162, 1
    %v1164 = vmax.f32 %v1162, %v1163
    %v1165 = vsel %vm732, %v724, -inf
    %v1166 = vsel %vm732, %v725, -inf
    %v1167 = vmax.f32 %v1165, %v1166
    %v1168 = vrot.slane %v1167, 4
    %v1169 = vmax.f32 %v1167, %v1168
    %v1170 = vrot.slane %v1169, 2
    %v1171 = vmax.f32 %v1169, %v1170
    %v1172 = vrot.slane %v1171, 1
    %v1173 = vmax.f32 %v1171, %v1172
    %v1174 = vsel %vm732, %v726, -inf
    %v1175 = vsel %vm732, %v727, -inf
    %v1176 = vmax.f32 %v1174, %v1175
    %v1177 = vrot.slane %v1176, 4
    %v1178 = vmax.f32 %v1176, %v1177
    %v1179 = vrot.slane %v1178, 2
    %v1180 = vmax.f32 %v1178, %v1179
    %v1181 = vrot.slane %v1180, 1
    %v1182 = vmax.f32 %v1180, %v1181
    %v1183 = vsel %vm732, %v728, -inf
    %v1184 = vsel %vm732, %v729, -inf
    %v1185 = vmax.f32 %v1183, %v1184
    %v1186 = vrot.slane %v1185, 4
    %v1187 = vmax.f32 %v1185, %v1186
    %v1188 = vrot.slane %v1187, 2
    %v1189 = vmax.f32 %v1187, %v1188
    %v1190 = vrot.slane %v1189, 1
    %v1191 = vmax.f32 %v1189, %v1190
    %v1192 = vsel %vm732, %v730, -inf
    %v1193 = vsel %vm732, %v731, -inf
    %v1194 = vmax.f32 %v1192, %v1193
    %v1195 = vrot.slane %v1194, 4
    %v1196 = vmax.f32 %v1194, %v1195
    %v1197 = vrot.slane %v1196, 2
    %v1198 = vmax.f32 %v1196, %v1197
    %v1199 = vrot.slane %v1198, 1
    %v1200 = vmax.f32 %v1198, %v1199
    %v1201 = vld [vmem:[%s2] sm:$0xf]
    %v1202 = vld [vmem:[%s2 + $0x4] sm:$0xf]
    %v1203 = vld [vmem:[%s2 + $0x8] sm:$0xf]
    %v1204 = vld [vmem:[%s2 + $0xc] sm:$0xf]
    %v1205 = vld [vmem:[%s2 + $0x10] sm:$0xf]
    %v1206 = vld [vmem:[%s2 + $0x14] sm:$0xf]
    %v1207 = vld [vmem:[%s2 + $0x18] sm:$0x3]
    %v1208 = vpack.c.bf16 %v39, %v39
    %v1209 = vpack.c.bf16 %v40, %v40
    %v1217 = vunpack.c.l.b16 %v1201
    %v1218 = vunpack.c.l.b16 %v1202
    %v1219 = vunpack.c.l.b16 %v1203
    %v1220 = vunpack.c.l.b16 %v1204
    %v1221 = vunpack.c.l.b16 %v1205
    %v1222 = vunpack.c.l.b16 %v1206
    %v1223 = vunpack.c.l.b16 %v1207
    %v1224 = vpack.c.b16 %v1218, %v1217
    %v1225 = vpack.c.b16 %v1220, %v1219
    %v1226 = vpack.c.b16 %v1222, %v1221
    %v1227 = vpack.c.b16 %v1223, %v1223
    %v1230 = vunpack.c.l.b16 %v1208
    %v1231 = vunpack.c.l.b16 %v1209
    %v1232 = vrot.slane %v1231, 7
    %v1233 = vsel %vm44, %v1232, %v1230
    %v1234 = vpack.c.b16 %v1233, %v1233
    %vm1235 = vcmask 15360
    %v1237 = vsel %vm1235, %v1224, 0
    %v1240 = vsel %vm1235, %v1225, 0
    %v1243 = vsel %vm1235, %v1226, 0
    %v1246 = vsel %vm1235, %v1227, 0
    %vm1248 = vcmask 1040384
    %v1250 = vsel %vm1248, %v1234, 0
    %1252 = vmatprep.subr.bf16.mxu0 0
    %1253 = vmatpush1.bf16.msra.mxu0 %v1250
    %1254 = vmatprep.subr.bf16.mxu0 0
    %1255 = vmatpush1.bf16.msra.mxu0 0
    %1256 = vmatprep.subr.bf16.mxu0 0
    %1257 = vmatpush1.bf16.msra.mxu0 0
    %1258 = vmatprep.subr.bf16.mxu0 0
    %1259 = vmatpush1.bf16.msra.mxu0 0
    %1260 = vmatprep.subr.bf16.mxu0 0
    %1261 = vmatpush1.bf16.msra.mxu0 0
    %1262 = vmatprep.subr.bf16.mxu0 0
    %1263 = vmatpush1.bf16.msra.mxu0 0
    %1264 = vmatprep.subr.bf16.mxu0 0
    %1265 = vmatpush1.bf16.msra.mxu0 0
    %1266 = vmatprep.subr.bf16.mxu0 0
    %1267 = vmatpush1.bf16.msra.mxu0 0
    %1268 = vmatprep.subr.bf16.mxu0 0
    %1269 = vmatpush1.bf16.msra.mxu0 0
    %1270 = vmatprep.subr.bf16.mxu0 0
    %1271 = vmatpush1.bf16.msra.mxu0 0
    %1272 = vmatprep.subr.bf16.mxu0 0
    %1273 = vmatpush1.bf16.msra.mxu0 0
    %1274 = vmatprep.subr.bf16.mxu0 0
    %1275 = vmatpush1.bf16.msra.mxu0 0
    %1276 = vmatprep.subr.bf16.mxu0 0
    %1277 = vmatpush1.bf16.msra.mxu0 0
    %1278 = vmatprep.subr.bf16.mxu0 0
    %1279 = vmatpush1.bf16.msra.mxu0 0
    %1280 = vmatprep.subr.bf16.mxu0 0
    %1281 = vmatpush1.bf16.msra.mxu0 0
    %1282 = vmatprep.subr.bf16.mxu0 0
    %1283 = vmatpush1.bf16.msra.mxu0 0
    %1284 = vmatprep.mubr.bf16.mxu0 0
    %1285 = vmatmul.mubr.bf16.gmra.mrb[0].mxu0 %v1237
    %v1286 = vpop.f32.mrb[0].mxu0
    %v1287 = vadd.f32 0.0, %v1286
    %v1288 = vpop.f32.mrb[0].mxu0
    %v1289 = vpop.f32.mrb[0].mxu0
    %v1290 = vadd.f32 0.0, %v1289
    %v1291 = vpop.f32.mrb[0].mxu0
    %1292 = vmatprep.mubr.bf16.mxu0 0
    %1293 = vmatmul.mubr.bf16.gmra.mrb[0].mxu0 %v1240
    %v1294 = vpop.f32.mrb[0].mxu0
    %v1295 = vadd.f32 0.0, %v1294
    %v1296 = vpop.f32.mrb[0].mxu0
    %v1297 = vpop.f32.mrb[0].mxu0
    %v1298 = vadd.f32 0.0, %v1297
    %v1299 = vpop.f32.mrb[0].mxu0
    %1300 = vmatprep.mubr.bf16.mxu0 0
    %1301 = vmatmul.mubr.bf16.gmra.mrb[0].mxu0 %v1243
    %v1302 = vpop.f32.mrb[0].mxu0
    %v1303 = vadd.f32 0.0, %v1302
    %v1304 = vpop.f32.mrb[0].mxu0
    %v1305 = vpop.f32.mrb[0].mxu0
    %v1306 = vadd.f32 0.0, %v1305
    %v1307 = vpop.f32.mrb[0].mxu0
    %1308 = vmatprep.mubr.bf16.mxu0 0
    %1309 = vmatmul.mubr.bf16.gmra.mrb[0].mxu0 %v1246
    %v1310 = vpop.f32.mrb[0].mxu0
    %v1311 = vadd.f32 0.0, %v1310
    %v1312 = vpop.f32.mrb[0].mxu0
    %v1313 = vpop.f32.mrb[0].mxu0
    %v1314 = vpop.f32.mrb[0].mxu0
    %1315 = vdwg.mxu0
    %v1368 = vsel %vm44, %v750, %v741
    %vm1369 = vcmask 1042434
    %v1370 = vsel %vm1369, %v759, %v1368
    %vm1371 = vcmask 1043459
    %v1372 = vsel %vm1371, %v768, %v1370
    %vm1373 = vcmask 1044484
    %v1374 = vsel %vm1373, %v777, %v1372
    %vm1375 = vcmask 1045509
    %v1376 = vsel %vm1375, %v786, %v1374
    %vm1377 = vcmask 1046534
    %v1378 = vsel %vm1377, %v795, %v1376
    %vm1379 = vcmask 1047559
    %v1380 = vsel %vm1379, %v804, %v1378
    %v1381 = vsel %vm44, %v822, %v813
    %v1382 = vsel %vm1369, %v831, %v1381
    %v1383 = vsel %vm1371, %v840, %v1382
    %v1384 = vsel %vm1373, %v849, %v1383
    %v1385 = vsel %vm1375, %v858, %v1384
    %v1386 = vsel %vm1377, %v867, %v1385
    %v1387 = vsel %vm1379, %v876, %v1386
    %v1388 = vsel %vm44, %v894, %v885
    %v1389 = vsel %vm1369, %v903, %v1388
    %v1390 = vsel %vm1371, %v912, %v1389
    %v1391 = vsel %vm1373, %v921, %v1390
    %v1392 = vsel %vm1375, %v930, %v1391
    %v1393 = vsel %vm1377, %v939, %v1392
    %v1394 = vsel %vm1379, %v948, %v1393
    %v1395 = vsel %vm44, %v966, %v957
    %v1396 = vsel %vm1369, %v975, %v1395
    %v1397 = vsel %vm1371, %v984, %v1396
    %v1398 = vsel %vm1373, %v993, %v1397
    %v1399 = vsel %vm1375, %v1002, %v1398
    %v1400 = vsel %vm1377, %v1011, %v1399
    %v1401 = vsel %vm1379, %v1020, %v1400
    %v1402 = vsel %vm44, %v1038, %v1029
    %v1403 = vsel %vm1369, %v1047, %v1402
    %v1404 = vsel %vm1371, %v1056, %v1403
    %v1405 = vsel %vm1373, %v1065, %v1404
    %v1406 = vsel %vm1375, %v1074, %v1405
    %v1407 = vsel %vm1377, %v1083, %v1406
    %v1408 = vsel %vm1379, %v1092, %v1407
    %v1409 = vsel %vm44, %v1110, %v1101
    %v1410 = vsel %vm1369, %v1119, %v1409
    %v1411 = vsel %vm1371, %v1128, %v1410
    %v1412 = vsel %vm1373, %v1137, %v1411
    %v1413 = vsel %vm1375, %v1146, %v1412
    %v1414 = vsel %vm1377, %v1155, %v1413
    %v1415 = vsel %vm1379, %v1164, %v1414
    %v1416 = vsel %vm44, %v1182, %v1173
    %v1417 = vsel %vm1369, %v1191, %v1416
    %v1418 = vsel %vm1371, %v1200, %v1417
    %1433 = vrot.lane.b32.xlu0 %v1287, 32
    %v1434 = vpop.permute.xlu0 %1433
    %1435 = vrot.lane.b32.xlu0 %v1290, 32
    %v1436 = vpop.permute.xlu0 %1435
    %1437 = vrot.lane.b32.xlu0 %v1295, 32
    %v1438 = vpop.permute.xlu0 %1437
    %1439 = vrot.lane.b32.xlu0 %v1298, 32
    %v1440 = vpop.permute.xlu0 %1439
    %1441 = vrot.lane.b32.xlu0 %v1303, 32
    %v1442 = vpop.permute.xlu0 %1441
    %1443 = vrot.lane.b32.xlu0 %v1306, 32
    %v1444 = vpop.permute.xlu0 %1443
    %1445 = vrot.lane.b32.xlu0 %v1311, 32
    %v1446 = vpop.permute.xlu0 %1445
    %v1454 = vsel %vm732, %v1380, %v1434
    %v1455 = vsel %vm732, %v1387, %v1436
    %v1456 = vsel %vm732, %v1394, %v1438
    %v1457 = vsel %vm732, %v1401, %v1440
    %v1458 = vsel %vm732, %v1408, %v1442
    %v1459 = vsel %vm732, %v1415, %v1444
    %v1460 = vsel %vm732, %v1418, %v1446
    %v1461 = vpack.c.bf16 %v1455, %v1454
    %v1462 = vpack.c.bf16 %v1457, %v1456
    %v1463 = vpack.c.bf16 %v1459, %v1458
    %v1464 = vpack.c.bf16 %v1460, %v1460
    %v1465 = vld [vmem:[%s4] sm:$0xf]
    %v1466 = vld [vmem:[%s4 + $0x4] sm:$0xf]
    %v1467 = vld [vmem:[%s4 + $0x8] sm:$0xf]
    %v1468 = vld [vmem:[%s4 + $0xc] sm:$0xf]
    %v1469 = vld [vmem:[%s4 + $0x10] sm:$0xf]
    %v1470 = vld [vmem:[%s4 + $0x14] sm:$0xf]
    %v1471 = vld [vmem:[%s4 + $0x18] sm:$0xf]
    %v1472 = vld [vmem:[%s4 + $0x1c] sm:$0xf]
    %v1473 = vld [vmem:[%s3] sm:$0xff]
    %v1474 = vld [vmem:[%s3 + $0x8] sm:$0xff]
    %v1475 = vld [vmem:[%s3 + $0x10] sm:$0xff]
    %v1476 = vld [vmem:[%s3 + $0x18] sm:$0xff]
    %v1477 = vld [vmem:[%s3 + $0x20] sm:$0xff]
    %v1478 = vld [vmem:[%s3 + $0x28] sm:$0xff]
    %v1479 = vld [vmem:[%s3 + $0x30] sm:$0xf]
    %v1488 = vunpack.c.l.b16 %v1465
    %v1489 = vunpack.c.l.b16 %v1466
    %v1490 = vunpack.c.l.b16 %v1467
    %v1491 = vunpack.c.l.b16 %v1468
    %v1492 = vunpack.c.l.b16 %v1469
    %v1493 = vunpack.c.l.b16 %v1470
    %v1494 = vunpack.c.l.b16 %v1471
    %v1495 = vunpack.c.l.b16 %v1472
    %v1496 = vpack.c.b16 %v1489, %v1488
    %v1497 = vpack.c.b16 %v1491, %v1490
    %v1498 = vpack.c.b16 %v1493, %v1492
    %v1499 = vpack.c.b16 %v1495, %v1494
    %vm1504 = vcmask 523264
    %v1506 = vsel %vm1504, %v1461, 0
    %v1509 = vsel %vm1504, %v1462, 0
    %v1512 = vsel %vm1504, %v1463, 0
    %v1515 = vsel %vm1504, %v1464, 0
    %1517 = vmatprep.subr.bf16.mxu0 0
    %1518 = vmatpush1.bf16.msra.mxu0 %v1496
    %1519 = vmatprep.subr.bf16.mxu0 0
    %1520 = vmatpush1.bf16.msra.mxu0 %v1497
    %1521 = vmatprep.subr.bf16.mxu0 0
    %1522 = vmatpush1.bf16.msra.mxu0 %v1498
    %1523 = vmatprep.subr.bf16.mxu0 0
    %1524 = vmatpush1.bf16.msra.mxu0 %v1499
    %1525 = vmatprep.subr.bf16.mxu0 0
    %1526 = vmatpush1.bf16.msra.mxu0 0
    %1527 = vmatprep.subr.bf16.mxu0 0
    %1528 = vmatpush1.bf16.msra.mxu0 0
    %1529 = vmatprep.subr.bf16.mxu0 0
    %1530 = vmatpush1.bf16.msra.mxu0 0
    %1531 = vmatprep.subr.bf16.mxu0 0
    %1532 = vmatpush1.bf16.msra.mxu0 0
    %1533 = vmatprep.subr.bf16.mxu0 0
    %1534 = vmatpush1.bf16.msra.mxu0 0
    %1535 = vmatprep.subr.bf16.mxu0 0
    %1536 = vmatpush1.bf16.msra.mxu0 0
    %1537 = vmatprep.subr.bf16.mxu0 0
    %1538 = vmatpush1.bf16.msra.mxu0 0
    %1539 = vmatprep.subr.bf16.mxu0 0
    %1540 = vmatpush1.bf16.msra.mxu0 0
    %1541 = vmatprep.subr.bf16.mxu0 0
    %1542 = vmatpush1.bf16.msra.mxu0 0
    %1543 = vmatprep.subr.bf16.mxu0 0
    %1544 = vmatpush1.bf16.msra.mxu0 0
    %1545 = vmatprep.subr.bf16.mxu0 0
    %1546 = vmatpush1.bf16.msra.mxu0 0
    %1547 = vmatprep.subr.bf16.mxu0 0
    %1548 = vmatpush1.bf16.msra.mxu0 0
    %1549 = vmatprep.mubr.bf16.mxu0 0
    %1550 = vmatmul.mubr.bf16.gmra.mrb[0].mxu0 %v1506
    %v1551 = vpop.f32.mrb[0].mxu0
    %v1552 = vadd.f32 %v1473, %v1551
    %v1553 = vpop.f32.mrb[0].mxu0
    %v1554 = vpop.f32.mrb[0].mxu0
    %v1555 = vadd.f32 %v1474, %v1554
    %v1556 = vpop.f32.mrb[0].mxu0
    %1557 = vmatprep.mubr.bf16.mxu0 0
    %1558 = vmatmul.mubr.bf16.gmra.mrb[0].mxu0 %v1509
    %v1559 = vpop.f32.mrb[0].mxu0
    %v1560 = vadd.f32 %v1475, %v1559
    %v1561 = vpop.f32.mrb[0].mxu0
    %v1562 = vpop.f32.mrb[0].mxu0
    %v1563 = vadd.f32 %v1476, %v1562
    %v1564 = vpop.f32.mrb[0].mxu0
    %1565 = vmatprep.mubr.bf16.mxu0 0
    %1566 = vmatmul.mubr.bf16.gmra.mrb[0].mxu0 %v1512
    %v1567 = vpop.f32.mrb[0].mxu0
    %v1568 = vadd.f32 %v1477, %v1567
    %v1569 = vpop.f32.mrb[0].mxu0
    %v1570 = vpop.f32.mrb[0].mxu0
    %v1571 = vadd.f32 %v1478, %v1570
    %v1572 = vpop.f32.mrb[0].mxu0
    %1573 = vmatprep.mubr.bf16.mxu0 0
    %1574 = vmatmul.mubr.bf16.gmra.mrb[0].mxu0 %v1515
    %v1575 = vpop.f32.mrb[0].mxu0
    %v1576 = vadd.f32 %v1479, %v1575
    %v1577 = vpop.f32.mrb[0].mxu0
    %v1578 = vpop.f32.mrb[0].mxu0
    %v1579 = vpop.f32.mrb[0].mxu0
    %1580 = vdwg.mxu0
    %v1581 = vpack.c.bf16 %v1555, %v1552
    %v1582 = vpack.c.bf16 %v1563, %v1560
    %v1583 = vpack.c.bf16 %v1571, %v1568
    %v1584 = vpack.c.bf16 %v1576, %v1576
    %v1585 = vld [vmem:[%s5] sm:$0xf]
    %v1586 = vld [vmem:[%s5 + $0x4] sm:$0xf]
    %v1587 = vld [vmem:[%s5 + $0x8] sm:$0xf]
    %v1588 = vld [vmem:[%s5 + $0xc] sm:$0xf]
    %v1593 = vunpack.c.l.b16 %v1585
    %v1594 = vunpack.c.l.b16 %v1586
    %v1595 = vunpack.c.l.b16 %v1587
    %v1596 = vunpack.c.l.b16 %v1588
    %v1597 = vpack.c.b16 %v1594, %v1593
    %v1598 = vpack.c.b16 %v1596, %v1595
    %v1602 = vsel %vm732, %v1581, 0
    %v1605 = vsel %vm732, %v1582, 0
    %v1608 = vsel %vm732, %v1583, 0
    %v1611 = vsel %vm732, %v1584, 0
    %1613 = vmatprep.subr.bf16.mxu0 0
    %1614 = vmatpush1.bf16.msra.mxu0 %v1597
    %1615 = vmatprep.subr.bf16.mxu0 0
    %1616 = vmatpush1.bf16.msra.mxu0 %v1598
    %1617 = vmatprep.subr.bf16.mxu0 0
    %1618 = vmatpush1.bf16.msra.mxu0 0
    %1619 = vmatprep.subr.bf16.mxu0 0
    %1620 = vmatpush1.bf16.msra.mxu0 0
    %1621 = vmatprep.subr.bf16.mxu0 0
    %1622 = vmatpush1.bf16.msra.mxu0 0
    %1623 = vmatprep.subr.bf16.mxu0 0
    %1624 = vmatpush1.bf16.msra.mxu0 0
    %1625 = vmatprep.subr.bf16.mxu0 0
    %1626 = vmatpush1.bf16.msra.mxu0 0
    %1627 = vmatprep.subr.bf16.mxu0 0
    %1628 = vmatpush1.bf16.msra.mxu0 0
    %1629 = vmatprep.subr.bf16.mxu0 0
    %1630 = vmatpush1.bf16.msra.mxu0 0
    %1631 = vmatprep.subr.bf16.mxu0 0
    %1632 = vmatpush1.bf16.msra.mxu0 0
    %1633 = vmatprep.subr.bf16.mxu0 0
    %1634 = vmatpush1.bf16.msra.mxu0 0
    %1635 = vmatprep.subr.bf16.mxu0 0
    %1636 = vmatpush1.bf16.msra.mxu0 0
    %1637 = vmatprep.subr.bf16.mxu0 0
    %1638 = vmatpush1.bf16.msra.mxu0 0
    %1639 = vmatprep.subr.bf16.mxu0 0
    %1640 = vmatpush1.bf16.msra.mxu0 0
    %1641 = vmatprep.subr.bf16.mxu0 0
    %1642 = vmatpush1.bf16.msra.mxu0 0
    %1643 = vmatprep.subr.bf16.mxu0 0
    %1644 = vmatpush1.bf16.msra.mxu0 0
    %1645 = vmatprep.mubr.bf16.mxu0 0
    %1646 = vmatmul.mubr.bf16.gmra.mrb[0].mxu0 %v1602
    %v1647 = vpop.f32.mrb[0].mxu0
    %v1648 = vadd.f32 0.0, %v1647
    %v1649 = vpop.f32.mrb[0].mxu0
    %v1650 = vpop.f32.mrb[0].mxu0
    %v1651 = vadd.f32 0.0, %v1650
    %v1652 = vpop.f32.mrb[0].mxu0
    %1653 = vmatprep.mubr.bf16.mxu0 0
    %1654 = vmatmul.mubr.bf16.gmra.mrb[0].mxu0 %v1605
    %v1655 = vpop.f32.mrb[0].mxu0
    %v1656 = vadd.f32 0.0, %v1655
    %v1657 = vpop.f32.mrb[0].mxu0
    %v1658 = vpop.f32.mrb[0].mxu0
    %v1659 = vadd.f32 0.0, %v1658
    %v1660 = vpop.f32.mrb[0].mxu0
    %1661 = vmatprep.mubr.bf16.mxu0 0
    %1662 = vmatmul.mubr.bf16.gmra.mrb[0].mxu0 %v1608
    %v1663 = vpop.f32.mrb[0].mxu0
    %v1664 = vadd.f32 0.0, %v1663
    %v1665 = vpop.f32.mrb[0].mxu0
    %v1666 = vpop.f32.mrb[0].mxu0
    %v1667 = vadd.f32 0.0, %v1666
    %v1668 = vpop.f32.mrb[0].mxu0
    %1669 = vmatprep.mubr.bf16.mxu0 0
    %1670 = vmatmul.mubr.bf16.gmra.mrb[0].mxu0 %v1611
    %v1671 = vpop.f32.mrb[0].mxu0
    %v1672 = vadd.f32 0.0, %v1671
    %v1673 = vpop.f32.mrb[0].mxu0
    %v1674 = vpop.f32.mrb[0].mxu0
    %v1675 = vpop.f32.mrb[0].mxu0
    %1676 = vdwg.mxu0
    %v1677 = vlaneseq
    %v1678 = vand.u32 %v1677, 127
    %vm1679 = vcmask 130048
    %v1680 = vsel %vm1679, %v1648, -inf
    %1681 = vmax.xlane.f32.xlu0 %v1680
    %v1682 = vpop.xlane.xlu0 %1681
    %v1683 = vsel %vm1679, %v1651, -inf
    %1684 = vmax.xlane.f32.xlu0 %v1683
    %v1685 = vpop.xlane.xlu0 %1684
    %v1686 = vsel %vm1679, %v1656, -inf
    %1687 = vmax.xlane.f32.xlu0 %v1686
    %v1688 = vpop.xlane.xlu0 %1687
    %v1689 = vsel %vm1679, %v1659, -inf
    %1690 = vmax.xlane.f32.xlu0 %v1689
    %v1691 = vpop.xlane.xlu0 %1690
    %v1692 = vsel %vm1679, %v1664, -inf
    %1693 = vmax.xlane.f32.xlu0 %v1692
    %v1694 = vpop.xlane.xlu0 %1693
    %v1695 = vsel %vm1679, %v1667, -inf
    %1696 = vmax.xlane.f32.xlu0 %v1695
    %v1697 = vpop.xlane.xlu0 %1696
    %vm1698 = vcmask 125952
    %v1699 = vsel %vm1698, %v1672, -inf
    %1700 = vmax.xlane.f32.xlu0 %v1699
    %v1701 = vpop.xlane.xlu0 %1700
    %vm1702 = vcmp.ge.f32.partialorder %v1648, %v1682
    %vm1703 = vcmp.ge.f32.partialorder %v1651, %v1685
    %vm1704 = vcmp.ge.f32.partialorder %v1656, %v1688
    %vm1705 = vcmp.ge.f32.partialorder %v1659, %v1691
    %vm1706 = vcmp.ge.f32.partialorder %v1664, %v1694
    %vm1707 = vcmp.ge.f32.partialorder %v1667, %v1697
    %vm1708 = vcmp.ge.f32.partialorder %v1672, %v1701
    %v1709 = vsel %vm1702, %v1678, 16
    %v1710 = vsel %vm1703, %v1678, 16
    %v1711 = vsel %vm1704, %v1678, 16
    %v1712 = vsel %vm1705, %v1678, 16
    %v1713 = vsel %vm1706, %v1678, 16
    %v1714 = vsel %vm1707, %v1678, 16
    %v1715 = vsel %vm1708, %v1678, 16
    %v1716 = vsel %vm1679, %v1709, 2147483647
    %v1717 = vand.u32 %v1716, 65535
    %v1718 = vshra.s32 %v1716, 16
    %v1719 = vcvt.s32.f32 %v1717
    %v1720 = vcvt.s32.f32 %v1718
    %1721 = vmin.xlane.f32.xlu0 %v1720
    %v1722 = vpop.xlane.xlu0 %1721
    %vm1723 = vcmp.eq.f32.partialorder %v1720, %v1722
    %v1724 = vsel %vm1723, %v1719, inf
    %1725 = vmin.xlane.f32.xlu0 %v1724
    %v1726 = vpop.xlane.xlu0 %1725
    %v1727 = vcvt.f32.s32 %v1726
    %v1728 = vcvt.f32.s32 %v1722
    %v1729 = vshll.u32 %v1728, 16
    %v1730 = vadd.s32 %v1729, %v1727
    %v1731 = vsel %vm1679, %v1710, 2147483647
    %v1732 = vand.u32 %v1731, 65535
    %v1733 = vshra.s32 %v1731, 16
    %v1734 = vcvt.s32.f32 %v1732
    %v1735 = vcvt.s32.f32 %v1733
    %1736 = vmin.xlane.f32.xlu0 %v1735
    %v1737 = vpop.xlane.xlu0 %1736
    %vm1738 = vcmp.eq.f32.partialorder %v1735, %v1737
    %v1739 = vsel %vm1738, %v1734, inf
    %1740 = vmin.xlane.f32.xlu0 %v1739
    %v1741 = vpop.xlane.xlu0 %1740
    %v1742 = vcvt.f32.s32 %v1741
    %v1743 = vcvt.f32.s32 %v1737
    %v1744 = vshll.u32 %v1743, 16
    %v1745 = vadd.s32 %v1744, %v1742
    %v1746 = vsel %vm1679, %v1711, 2147483647
    %v1747 = vand.u32 %v1746, 65535
    %v1748 = vshra.s32 %v1746, 16
    %v1749 = vcvt.s32.f32 %v1747
    %v1750 = vcvt.s32.f32 %v1748
    %1751 = vmin.xlane.f32.xlu0 %v1750
    %v1752 = vpop.xlane.xlu0 %1751
    %vm1753 = vcmp.eq.f32.partialorder %v1750, %v1752
    %v1754 = vsel %vm1753, %v1749, inf
    %1755 = vmin.xlane.f32.xlu0 %v1754
    %v1756 = vpop.xlane.xlu0 %1755
    %v1757 = vcvt.f32.s32 %v1756
    %v1758 = vcvt.f32.s32 %v1752
    %v1759 = vshll.u32 %v1758, 16
    %v1760 = vadd.s32 %v1759, %v1757
    %v1761 = vsel %vm1679, %v1712, 2147483647
    %v1762 = vand.u32 %v1761, 65535
    %v1763 = vshra.s32 %v1761, 16
    %v1764 = vcvt.s32.f32 %v1762
    %v1765 = vcvt.s32.f32 %v1763
    %1766 = vmin.xlane.f32.xlu0 %v1765
    %v1767 = vpop.xlane.xlu0 %1766
    %vm1768 = vcmp.eq.f32.partialorder %v1765, %v1767
    %v1769 = vsel %vm1768, %v1764, inf
    %1770 = vmin.xlane.f32.xlu0 %v1769
    %v1771 = vpop.xlane.xlu0 %1770
    %v1772 = vcvt.f32.s32 %v1771
    %v1773 = vcvt.f32.s32 %v1767
    %v1774 = vshll.u32 %v1773, 16
    %v1775 = vadd.s32 %v1774, %v1772
    %v1776 = vsel %vm1679, %v1713, 2147483647
    %v1777 = vand.u32 %v1776, 65535
    %v1778 = vshra.s32 %v1776, 16
    %v1779 = vcvt.s32.f32 %v1777
    %v1780 = vcvt.s32.f32 %v1778
    %1781 = vmin.xlane.f32.xlu0 %v1780
    %v1782 = vpop.xlane.xlu0 %1781
    %vm1783 = vcmp.eq.f32.partialorder %v1780, %v1782
    %v1784 = vsel %vm1783, %v1779, inf
    %1785 = vmin.xlane.f32.xlu0 %v1784
    %v1786 = vpop.xlane.xlu0 %1785
    %v1787 = vcvt.f32.s32 %v1786
    %v1788 = vcvt.f32.s32 %v1782
    %v1789 = vshll.u32 %v1788, 16
    %v1790 = vadd.s32 %v1789, %v1787
    %v1791 = vsel %vm1679, %v1714, 2147483647
    %v1792 = vand.u32 %v1791, 65535
    %v1793 = vshra.s32 %v1791, 16
    %v1794 = vcvt.s32.f32 %v1792
    %v1795 = vcvt.s32.f32 %v1793
    %1796 = vmin.xlane.f32.xlu0 %v1795
    %v1797 = vpop.xlane.xlu0 %1796
    %vm1798 = vcmp.eq.f32.partialorder %v1795, %v1797
    %v1799 = vsel %vm1798, %v1794, inf
    %1800 = vmin.xlane.f32.xlu0 %v1799
    %v1801 = vpop.xlane.xlu0 %1800
    %v1802 = vcvt.f32.s32 %v1801
    %v1803 = vcvt.f32.s32 %v1797
    %v1804 = vshll.u32 %v1803, 16
    %v1805 = vadd.s32 %v1804, %v1802
    %v1806 = vsel %vm1698, %v1715, 2147483647
    %v1807 = vand.u32 %v1806, 65535
    %v1808 = vshra.s32 %v1806, 16
    %v1809 = vcvt.s32.f32 %v1807
    %v1810 = vcvt.s32.f32 %v1808
    %1811 = vmin.xlane.f32.xlu0 %v1810
    %v1812 = vpop.xlane.xlu0 %1811
    %vm1813 = vcmp.eq.f32.partialorder %v1810, %v1812
    %v1814 = vsel %vm1813, %v1809, inf
    %1815 = vmin.xlane.f32.xlu0 %v1814
    %v1816 = vpop.xlane.xlu0 %1815
    %v1817 = vcvt.f32.s32 %v1816
    %v1818 = vcvt.f32.s32 %v1812
    %v1819 = vshll.u32 %v1818, 16
    %v1820 = vadd.s32 %v1819, %v1817
    %vm1821 = vcmp.eq.s32.totalorder %v1678, %v1730
    %vm1822 = vcmp.eq.s32.totalorder %v1678, %v1745
    %vm1823 = vcmp.eq.s32.totalorder %v1678, %v1760
    %vm1824 = vcmp.eq.s32.totalorder %v1678, %v1775
    %vm1825 = vcmp.eq.s32.totalorder %v1678, %v1790
    %vm1826 = vcmp.eq.s32.totalorder %v1678, %v1805
    %vm1827 = vcmp.eq.s32.totalorder %v1678, %v1820
    %v1828 = vsel %vm1821, 1, 0
    %v1829 = vsel %vm1822, 1, 0
    %v1830 = vsel %vm1823, 1, 0
    %v1831 = vsel %vm1824, 1, 0
    %v1832 = vsel %vm1825, 1, 0
    %v1833 = vsel %vm1826, 1, 0
    %v1834 = vsel %vm1827, 1, 0
    %v1835 = vcvt.s32.f32 %v1828
    %v1836 = vcvt.s32.f32 %v1829
    %v1837 = vcvt.s32.f32 %v1830
    %v1838 = vcvt.s32.f32 %v1831
    %v1839 = vcvt.s32.f32 %v1832
    %v1840 = vcvt.s32.f32 %v1833
    %v1841 = vcvt.s32.f32 %v1834
    %v1842 = vpack.c.bf16 %v1836, %v1835
    %v1843 = vpack.c.bf16 %v1838, %v1837
    %v1844 = vpack.c.bf16 %v1840, %v1839
    %v1845 = vpack.c.bf16 %v1841, %v1841
    %v1846 = vsel %vm1821, -inf, %v1648
    %v1847 = vsel %vm1822, -inf, %v1651
    %v1848 = vsel %vm1823, -inf, %v1656
    %v1849 = vsel %vm1824, -inf, %v1659
    %v1850 = vsel %vm1825, -inf, %v1664
    %v1851 = vsel %vm1826, -inf, %v1667
    %v1852 = vsel %vm1827, -inf, %v1672
    %v1853 = vsel %vm1679, %v1846, -inf
    %1854 = vmax.xlane.f32.xlu0 %v1853
    %v1855 = vpop.xlane.xlu0 %1854
    %v1856 = vsel %vm1679, %v1847, -inf
    %1857 = vmax.xlane.f32.xlu0 %v1856
    %v1858 = vpop.xlane.xlu0 %1857
    %v1859 = vsel %vm1679, %v1848, -inf
    %1860 = vmax.xlane.f32.xlu0 %v1859
    %v1861 = vpop.xlane.xlu0 %1860
    %v1862 = vsel %vm1679, %v1849, -inf
    %1863 = vmax.xlane.f32.xlu0 %v1862
    %v1864 = vpop.xlane.xlu0 %1863
    %v1865 = vsel %vm1679, %v1850, -inf
    %1866 = vmax.xlane.f32.xlu0 %v1865
    %v1867 = vpop.xlane.xlu0 %1866
    %v1868 = vsel %vm1679, %v1851, -inf
    %1869 = vmax.xlane.f32.xlu0 %v1868
    %v1870 = vpop.xlane.xlu0 %1869
    %v1871 = vsel %vm1698, %v1852, -inf
    %1872 = vmax.xlane.f32.xlu0 %v1871
    %v1873 = vpop.xlane.xlu0 %1872
    %vm1874 = vcmp.ge.f32.partialorder %v1846, %v1855
    %vm1875 = vcmp.ge.f32.partialorder %v1847, %v1858
    %vm1876 = vcmp.ge.f32.partialorder %v1848, %v1861
    %vm1877 = vcmp.ge.f32.partialorder %v1849, %v1864
    %vm1878 = vcmp.ge.f32.partialorder %v1850, %v1867
    %vm1879 = vcmp.ge.f32.partialorder %v1851, %v1870
    %vm1880 = vcmp.ge.f32.partialorder %v1852, %v1873
    %v1881 = vsel %vm1874, %v1678, 16
    %v1882 = vsel %vm1875, %v1678, 16
    %v1883 = vsel %vm1876, %v1678, 16
    %v1884 = vsel %vm1877, %v1678, 16
    %v1885 = vsel %vm1878, %v1678, 16
    %v1886 = vsel %vm1879, %v1678, 16
    %v1887 = vsel %vm1880, %v1678, 16
    %v1888 = vsel %vm1679, %v1881, 2147483647
    %v1889 = vand.u32 %v1888, 65535
    %v1890 = vshra.s32 %v1888, 16
    %v1891 = vcvt.s32.f32 %v1889
    %v1892 = vcvt.s32.f32 %v1890
    %1893 = vmin.xlane.f32.xlu0 %v1892
    %v1894 = vpop.xlane.xlu0 %1893
    %vm1895 = vcmp.eq.f32.partialorder %v1892, %v1894
    %v1896 = vsel %vm1895, %v1891, inf
    %1897 = vmin.xlane.f32.xlu0 %v1896
    %v1898 = vpop.xlane.xlu0 %1897
    %v1899 = vcvt.f32.s32 %v1898
    %v1900 = vcvt.f32.s32 %v1894
    %v1901 = vshll.u32 %v1900, 16
    %v1902 = vadd.s32 %v1901, %v1899
    %v1903 = vsel %vm1679, %v1882, 2147483647
    %v1904 = vand.u32 %v1903, 65535
    %v1905 = vshra.s32 %v1903, 16
    %v1906 = vcvt.s32.f32 %v1904
    %v1907 = vcvt.s32.f32 %v1905
    %1908 = vmin.xlane.f32.xlu0 %v1907
    %v1909 = vpop.xlane.xlu0 %1908
    %vm1910 = vcmp.eq.f32.partialorder %v1907, %v1909
    %v1911 = vsel %vm1910, %v1906, inf
    %1912 = vmin.xlane.f32.xlu0 %v1911
    %v1913 = vpop.xlane.xlu0 %1912
    %v1914 = vcvt.f32.s32 %v1913
    %v1915 = vcvt.f32.s32 %v1909
    %v1916 = vshll.u32 %v1915, 16
    %v1917 = vadd.s32 %v1916, %v1914
    %v1918 = vsel %vm1679, %v1883, 2147483647
    %v1919 = vand.u32 %v1918, 65535
    %v1920 = vshra.s32 %v1918, 16
    %v1921 = vcvt.s32.f32 %v1919
    %v1922 = vcvt.s32.f32 %v1920
    %1923 = vmin.xlane.f32.xlu0 %v1922
    %v1924 = vpop.xlane.xlu0 %1923
    %vm1925 = vcmp.eq.f32.partialorder %v1922, %v1924
    %v1926 = vsel %vm1925, %v1921, inf
    %1927 = vmin.xlane.f32.xlu0 %v1926
    %v1928 = vpop.xlane.xlu0 %1927
    %v1929 = vcvt.f32.s32 %v1928
    %v1930 = vcvt.f32.s32 %v1924
    %v1931 = vshll.u32 %v1930, 16
    %v1932 = vadd.s32 %v1931, %v1929
    %v1933 = vsel %vm1679, %v1884, 2147483647
    %v1934 = vand.u32 %v1933, 65535
    %v1935 = vshra.s32 %v1933, 16
    %v1936 = vcvt.s32.f32 %v1934
    %v1937 = vcvt.s32.f32 %v1935
    %1938 = vmin.xlane.f32.xlu0 %v1937
    %v1939 = vpop.xlane.xlu0 %1938
    %vm1940 = vcmp.eq.f32.partialorder %v1937, %v1939
    %v1941 = vsel %vm1940, %v1936, inf
    %1942 = vmin.xlane.f32.xlu0 %v1941
    %v1943 = vpop.xlane.xlu0 %1942
    %v1944 = vcvt.f32.s32 %v1943
    %v1945 = vcvt.f32.s32 %v1939
    %v1946 = vshll.u32 %v1945, 16
    %v1947 = vadd.s32 %v1946, %v1944
    %v1948 = vsel %vm1679, %v1885, 2147483647
    %v1949 = vand.u32 %v1948, 65535
    %v1950 = vshra.s32 %v1948, 16
    %v1951 = vcvt.s32.f32 %v1949
    %v1952 = vcvt.s32.f32 %v1950
    %1953 = vmin.xlane.f32.xlu0 %v1952
    %v1954 = vpop.xlane.xlu0 %1953
    %vm1955 = vcmp.eq.f32.partialorder %v1952, %v1954
    %v1956 = vsel %vm1955, %v1951, inf
    %1957 = vmin.xlane.f32.xlu0 %v1956
    %v1958 = vpop.xlane.xlu0 %1957
    %v1959 = vcvt.f32.s32 %v1958
    %v1960 = vcvt.f32.s32 %v1954
    %v1961 = vshll.u32 %v1960, 16
    %v1962 = vadd.s32 %v1961, %v1959
    %v1963 = vsel %vm1679, %v1886, 2147483647
    %v1964 = vand.u32 %v1963, 65535
    %v1965 = vshra.s32 %v1963, 16
    %v1966 = vcvt.s32.f32 %v1964
    %v1967 = vcvt.s32.f32 %v1965
    %1968 = vmin.xlane.f32.xlu0 %v1967
    %v1969 = vpop.xlane.xlu0 %1968
    %vm1970 = vcmp.eq.f32.partialorder %v1967, %v1969
    %v1971 = vsel %vm1970, %v1966, inf
    %1972 = vmin.xlane.f32.xlu0 %v1971
    %v1973 = vpop.xlane.xlu0 %1972
    %v1974 = vcvt.f32.s32 %v1973
    %v1975 = vcvt.f32.s32 %v1969
    %v1976 = vshll.u32 %v1975, 16
    %v1977 = vadd.s32 %v1976, %v1974
    %v1978 = vsel %vm1698, %v1887, 2147483647
    %v1979 = vand.u32 %v1978, 65535
    %v1980 = vshra.s32 %v1978, 16
    %v1981 = vcvt.s32.f32 %v1979
    %v1982 = vcvt.s32.f32 %v1980
    %1983 = vmin.xlane.f32.xlu0 %v1982
    %v1984 = vpop.xlane.xlu0 %1983
    %vm1985 = vcmp.eq.f32.partialorder %v1982, %v1984
    %v1986 = vsel %vm1985, %v1981, inf
    %1987 = vmin.xlane.f32.xlu0 %v1986
    %v1988 = vpop.xlane.xlu0 %1987
    %v1989 = vcvt.f32.s32 %v1988
    %v1990 = vcvt.f32.s32 %v1984
    %v1991 = vshll.u32 %v1990, 16
    %v1992 = vadd.s32 %v1991, %v1989
    %vm1993 = vcmp.eq.s32.totalorder %v1678, %v1902
    %vm1994 = vcmp.eq.s32.totalorder %v1678, %v1917
    %vm1995 = vcmp.eq.s32.totalorder %v1678, %v1932
    %vm1996 = vcmp.eq.s32.totalorder %v1678, %v1947
    %vm1997 = vcmp.eq.s32.totalorder %v1678, %v1962
    %vm1998 = vcmp.eq.s32.totalorder %v1678, %v1977
    %vm1999 = vcmp.eq.s32.totalorder %v1678, %v1992
    %v2000 = vsel %vm1993, 1, 0
    %v2001 = vsel %vm1994, 1, 0
    %v2002 = vsel %vm1995, 1, 0
    %v2003 = vsel %vm1996, 1, 0
    %v2004 = vsel %vm1997, 1, 0
    %v2005 = vsel %vm1998, 1, 0
    %v2006 = vsel %vm1999, 1, 0
    %v2007 = vcvt.s32.f32 %v2000
    %v2008 = vcvt.s32.f32 %v2001
    %v2009 = vcvt.s32.f32 %v2002
    %v2010 = vcvt.s32.f32 %v2003
    %v2011 = vcvt.s32.f32 %v2004
    %v2012 = vcvt.s32.f32 %v2005
    %v2013 = vcvt.s32.f32 %v2006
    %v2014 = vpack.c.bf16 %v2008, %v2007
    %v2015 = vpack.c.bf16 %v2010, %v2009
    %v2016 = vpack.c.bf16 %v2012, %v2011
    %v2017 = vpack.c.bf16 %v2013, %v2013
    %v2018 = vsel %vm1993, -inf, %v1846
    %v2019 = vsel %vm1994, -inf, %v1847
    %v2020 = vsel %vm1995, -inf, %v1848
    %v2021 = vsel %vm1996, -inf, %v1849
    %v2022 = vsel %vm1997, -inf, %v1850
    %v2023 = vsel %vm1998, -inf, %v1851
    %v2024 = vsel %vm1999, -inf, %v1852
    %v2025 = vsel %vm1679, %v2018, -inf
    %2026 = vmax.xlane.f32.xlu0 %v2025
    %v2027 = vpop.xlane.xlu0 %2026
    %v2028 = vsel %vm1679, %v2019, -inf
    %2029 = vmax.xlane.f32.xlu0 %v2028
    %v2030 = vpop.xlane.xlu0 %2029
    %v2031 = vsel %vm1679, %v2020, -inf
    %2032 = vmax.xlane.f32.xlu0 %v2031
    %v2033 = vpop.xlane.xlu0 %2032
    %v2034 = vsel %vm1679, %v2021, -inf
    %2035 = vmax.xlane.f32.xlu0 %v2034
    %v2036 = vpop.xlane.xlu0 %2035
    %v2037 = vsel %vm1679, %v2022, -inf
    %2038 = vmax.xlane.f32.xlu0 %v2037
    %v2039 = vpop.xlane.xlu0 %2038
    %v2040 = vsel %vm1679, %v2023, -inf
    %2041 = vmax.xlane.f32.xlu0 %v2040
    %v2042 = vpop.xlane.xlu0 %2041
    %v2043 = vsel %vm1698, %v2024, -inf
    %2044 = vmax.xlane.f32.xlu0 %v2043
    %v2045 = vpop.xlane.xlu0 %2044
    %vm2046 = vcmp.ge.f32.partialorder %v2018, %v2027
    %vm2047 = vcmp.ge.f32.partialorder %v2019, %v2030
    %vm2048 = vcmp.ge.f32.partialorder %v2020, %v2033
    %vm2049 = vcmp.ge.f32.partialorder %v2021, %v2036
    %vm2050 = vcmp.ge.f32.partialorder %v2022, %v2039
    %vm2051 = vcmp.ge.f32.partialorder %v2023, %v2042
    %vm2052 = vcmp.ge.f32.partialorder %v2024, %v2045
    %v2053 = vsel %vm2046, %v1678, 16
    %v2054 = vsel %vm2047, %v1678, 16
    %v2055 = vsel %vm2048, %v1678, 16
    %v2056 = vsel %vm2049, %v1678, 16
    %v2057 = vsel %vm2050, %v1678, 16
    %v2058 = vsel %vm2051, %v1678, 16
    %v2059 = vsel %vm2052, %v1678, 16
    %v2060 = vsel %vm1679, %v2053, 2147483647
    %v2061 = vand.u32 %v2060, 65535
    %v2062 = vshra.s32 %v2060, 16
    %v2063 = vcvt.s32.f32 %v2061
    %v2064 = vcvt.s32.f32 %v2062
    %2065 = vmin.xlane.f32.xlu0 %v2064
    %v2066 = vpop.xlane.xlu0 %2065
    %vm2067 = vcmp.eq.f32.partialorder %v2064, %v2066
    %v2068 = vsel %vm2067, %v2063, inf
    %2069 = vmin.xlane.f32.xlu0 %v2068
    %v2070 = vpop.xlane.xlu0 %2069
    %v2071 = vcvt.f32.s32 %v2070
    %v2072 = vcvt.f32.s32 %v2066
    %v2073 = vshll.u32 %v2072, 16
    %v2074 = vadd.s32 %v2073, %v2071
    %v2075 = vsel %vm1679, %v2054, 2147483647
    %v2076 = vand.u32 %v2075, 65535
    %v2077 = vshra.s32 %v2075, 16
    %v2078 = vcvt.s32.f32 %v2076
    %v2079 = vcvt.s32.f32 %v2077
    %2080 = vmin.xlane.f32.xlu0 %v2079
    %v2081 = vpop.xlane.xlu0 %2080
    %vm2082 = vcmp.eq.f32.partialorder %v2079, %v2081
    %v2083 = vsel %vm2082, %v2078, inf
    %2084 = vmin.xlane.f32.xlu0 %v2083
    %v2085 = vpop.xlane.xlu0 %2084
    %v2086 = vcvt.f32.s32 %v2085
    %v2087 = vcvt.f32.s32 %v2081
    %v2088 = vshll.u32 %v2087, 16
    %v2089 = vadd.s32 %v2088, %v2086
    %v2090 = vsel %vm1679, %v2055, 2147483647
    %v2091 = vand.u32 %v2090, 65535
    %v2092 = vshra.s32 %v2090, 16
    %v2093 = vcvt.s32.f32 %v2091
    %v2094 = vcvt.s32.f32 %v2092
    %2095 = vmin.xlane.f32.xlu0 %v2094
    %v2096 = vpop.xlane.xlu0 %2095
    %vm2097 = vcmp.eq.f32.partialorder %v2094, %v2096
    %v2098 = vsel %vm2097, %v2093, inf
    %2099 = vmin.xlane.f32.xlu0 %v2098
    %v2100 = vpop.xlane.xlu0 %2099
    %v2101 = vcvt.f32.s32 %v2100
    %v2102 = vcvt.f32.s32 %v2096
    %v2103 = vshll.u32 %v2102, 16
    %v2104 = vadd.s32 %v2103, %v2101
    %v2105 = vsel %vm1679, %v2056, 2147483647
    %v2106 = vand.u32 %v2105, 65535
    %v2107 = vshra.s32 %v2105, 16
    %v2108 = vcvt.s32.f32 %v2106
    %v2109 = vcvt.s32.f32 %v2107
    %2110 = vmin.xlane.f32.xlu0 %v2109
    %v2111 = vpop.xlane.xlu0 %2110
    %vm2112 = vcmp.eq.f32.partialorder %v2109, %v2111
    %v2113 = vsel %vm2112, %v2108, inf
    %2114 = vmin.xlane.f32.xlu0 %v2113
    %v2115 = vpop.xlane.xlu0 %2114
    %v2116 = vcvt.f32.s32 %v2115
    %v2117 = vcvt.f32.s32 %v2111
    %v2118 = vshll.u32 %v2117, 16
    %v2119 = vadd.s32 %v2118, %v2116
    %v2120 = vsel %vm1679, %v2057, 2147483647
    %v2121 = vand.u32 %v2120, 65535
    %v2122 = vshra.s32 %v2120, 16
    %v2123 = vcvt.s32.f32 %v2121
    %v2124 = vcvt.s32.f32 %v2122
    %2125 = vmin.xlane.f32.xlu0 %v2124
    %v2126 = vpop.xlane.xlu0 %2125
    %vm2127 = vcmp.eq.f32.partialorder %v2124, %v2126
    %v2128 = vsel %vm2127, %v2123, inf
    %2129 = vmin.xlane.f32.xlu0 %v2128
    %v2130 = vpop.xlane.xlu0 %2129
    %v2131 = vcvt.f32.s32 %v2130
    %v2132 = vcvt.f32.s32 %v2126
    %v2133 = vshll.u32 %v2132, 16
    %v2134 = vadd.s32 %v2133, %v2131
    %v2135 = vsel %vm1679, %v2058, 2147483647
    %v2136 = vand.u32 %v2135, 65535
    %v2137 = vshra.s32 %v2135, 16
    %v2138 = vcvt.s32.f32 %v2136
    %v2139 = vcvt.s32.f32 %v2137
    %2140 = vmin.xlane.f32.xlu0 %v2139
    %v2141 = vpop.xlane.xlu0 %2140
    %vm2142 = vcmp.eq.f32.partialorder %v2139, %v2141
    %v2143 = vsel %vm2142, %v2138, inf
    %2144 = vmin.xlane.f32.xlu0 %v2143
    %v2145 = vpop.xlane.xlu0 %2144
    %v2146 = vcvt.f32.s32 %v2145
    %v2147 = vcvt.f32.s32 %v2141
    %v2148 = vshll.u32 %v2147, 16
    %v2149 = vadd.s32 %v2148, %v2146
    %v2150 = vsel %vm1698, %v2059, 2147483647
    %v2151 = vand.u32 %v2150, 65535
    %v2152 = vshra.s32 %v2150, 16
    %v2153 = vcvt.s32.f32 %v2151
    %v2154 = vcvt.s32.f32 %v2152
    %2155 = vmin.xlane.f32.xlu0 %v2154
    %v2156 = vpop.xlane.xlu0 %2155
    %vm2157 = vcmp.eq.f32.partialorder %v2154, %v2156
    %v2158 = vsel %vm2157, %v2153, inf
    %2159 = vmin.xlane.f32.xlu0 %v2158
    %v2160 = vpop.xlane.xlu0 %2159
    %v2161 = vcvt.f32.s32 %v2160
    %v2162 = vcvt.f32.s32 %v2156
    %v2163 = vshll.u32 %v2162, 16
    %v2164 = vadd.s32 %v2163, %v2161
    %vm2165 = vcmp.eq.s32.totalorder %v1678, %v2074
    %vm2166 = vcmp.eq.s32.totalorder %v1678, %v2089
    %vm2167 = vcmp.eq.s32.totalorder %v1678, %v2104
    %vm2168 = vcmp.eq.s32.totalorder %v1678, %v2119
    %vm2169 = vcmp.eq.s32.totalorder %v1678, %v2134
    %vm2170 = vcmp.eq.s32.totalorder %v1678, %v2149
    %vm2171 = vcmp.eq.s32.totalorder %v1678, %v2164
    %v2172 = vsel %vm2165, 1, 0
    %v2173 = vsel %vm2166, 1, 0
    %v2174 = vsel %vm2167, 1, 0
    %v2175 = vsel %vm2168, 1, 0
    %v2176 = vsel %vm2169, 1, 0
    %v2177 = vsel %vm2170, 1, 0
    %v2178 = vsel %vm2171, 1, 0
    %v2179 = vcvt.s32.f32 %v2172
    %v2180 = vcvt.s32.f32 %v2173
    %v2181 = vcvt.s32.f32 %v2174
    %v2182 = vcvt.s32.f32 %v2175
    %v2183 = vcvt.s32.f32 %v2176
    %v2184 = vcvt.s32.f32 %v2177
    %v2185 = vcvt.s32.f32 %v2178
    %v2186 = vpack.c.bf16 %v2180, %v2179
    %v2187 = vpack.c.bf16 %v2182, %v2181
    %v2188 = vpack.c.bf16 %v2184, %v2183
    %v2189 = vpack.c.bf16 %v2185, %v2185
    %v2190 = vsel %vm2165, -inf, %v2018
    %v2191 = vsel %vm2166, -inf, %v2019
    %v2192 = vsel %vm2167, -inf, %v2020
    %v2193 = vsel %vm2168, -inf, %v2021
    %v2194 = vsel %vm2169, -inf, %v2022
    %v2195 = vsel %vm2170, -inf, %v2023
    %v2196 = vsel %vm2171, -inf, %v2024
    %v2197 = vsel %vm1679, %v2190, -inf
    %2198 = vmax.xlane.f32.xlu0 %v2197
    %v2199 = vpop.xlane.xlu0 %2198
    %v2200 = vsel %vm1679, %v2191, -inf
    %2201 = vmax.xlane.f32.xlu0 %v2200
    %v2202 = vpop.xlane.xlu0 %2201
    %v2203 = vsel %vm1679, %v2192, -inf
    %2204 = vmax.xlane.f32.xlu0 %v2203
    %v2205 = vpop.xlane.xlu0 %2204
    %v2206 = vsel %vm1679, %v2193, -inf
    %2207 = vmax.xlane.f32.xlu0 %v2206
    %v2208 = vpop.xlane.xlu0 %2207
    %v2209 = vsel %vm1679, %v2194, -inf
    %2210 = vmax.xlane.f32.xlu0 %v2209
    %v2211 = vpop.xlane.xlu0 %2210
    %v2212 = vsel %vm1679, %v2195, -inf
    %2213 = vmax.xlane.f32.xlu0 %v2212
    %v2214 = vpop.xlane.xlu0 %2213
    %v2215 = vsel %vm1698, %v2196, -inf
    %2216 = vmax.xlane.f32.xlu0 %v2215
    %v2217 = vpop.xlane.xlu0 %2216
    %vm2218 = vcmp.ge.f32.partialorder %v2190, %v2199
    %vm2219 = vcmp.ge.f32.partialorder %v2191, %v2202
    %vm2220 = vcmp.ge.f32.partialorder %v2192, %v2205
    %vm2221 = vcmp.ge.f32.partialorder %v2193, %v2208
    %vm2222 = vcmp.ge.f32.partialorder %v2194, %v2211
    %vm2223 = vcmp.ge.f32.partialorder %v2195, %v2214
    %vm2224 = vcmp.ge.f32.partialorder %v2196, %v2217
    %v2225 = vsel %vm2218, %v1678, 16
    %v2226 = vsel %vm2219, %v1678, 16
    %v2227 = vsel %vm2220, %v1678, 16
    %v2228 = vsel %vm2221, %v1678, 16
    %v2229 = vsel %vm2222, %v1678, 16
    %v2230 = vsel %vm2223, %v1678, 16
    %v2231 = vsel %vm2224, %v1678, 16
    %v2232 = vsel %vm1679, %v2225, 2147483647
    %v2233 = vand.u32 %v2232, 65535
    %v2234 = vshra.s32 %v2232, 16
    %v2235 = vcvt.s32.f32 %v2233
    %v2236 = vcvt.s32.f32 %v2234
    %2237 = vmin.xlane.f32.xlu0 %v2236
    %v2238 = vpop.xlane.xlu0 %2237
    %vm2239 = vcmp.eq.f32.partialorder %v2236, %v2238
    %v2240 = vsel %vm2239, %v2235, inf
    %2241 = vmin.xlane.f32.xlu0 %v2240
    %v2242 = vpop.xlane.xlu0 %2241
    %v2243 = vcvt.f32.s32 %v2242
    %v2244 = vcvt.f32.s32 %v2238
    %v2245 = vshll.u32 %v2244, 16
    %v2246 = vadd.s32 %v2245, %v2243
    %v2247 = vsel %vm1679, %v2226, 2147483647
    %v2248 = vand.u32 %v2247, 65535
    %v2249 = vshra.s32 %v2247, 16
    %v2250 = vcvt.s32.f32 %v2248
    %v2251 = vcvt.s32.f32 %v2249
    %2252 = vmin.xlane.f32.xlu0 %v2251
    %v2253 = vpop.xlane.xlu0 %2252
    %vm2254 = vcmp.eq.f32.partialorder %v2251, %v2253
    %v2255 = vsel %vm2254, %v2250, inf
    %2256 = vmin.xlane.f32.xlu0 %v2255
    %v2257 = vpop.xlane.xlu0 %2256
    %v2258 = vcvt.f32.s32 %v2257
    %v2259 = vcvt.f32.s32 %v2253
    %v2260 = vshll.u32 %v2259, 16
    %v2261 = vadd.s32 %v2260, %v2258
    %v2262 = vsel %vm1679, %v2227, 2147483647
    %v2263 = vand.u32 %v2262, 65535
    %v2264 = vshra.s32 %v2262, 16
    %v2265 = vcvt.s32.f32 %v2263
    %v2266 = vcvt.s32.f32 %v2264
    %2267 = vmin.xlane.f32.xlu0 %v2266
    %v2268 = vpop.xlane.xlu0 %2267
    %vm2269 = vcmp.eq.f32.partialorder %v2266, %v2268
    %v2270 = vsel %vm2269, %v2265, inf
    %2271 = vmin.xlane.f32.xlu0 %v2270
    %v2272 = vpop.xlane.xlu0 %2271
    %v2273 = vcvt.f32.s32 %v2272
    %v2274 = vcvt.f32.s32 %v2268
    %v2275 = vshll.u32 %v2274, 16
    %v2276 = vadd.s32 %v2275, %v2273
    %v2277 = vsel %vm1679, %v2228, 2147483647
    %v2278 = vand.u32 %v2277, 65535
    %v2279 = vshra.s32 %v2277, 16
    %v2280 = vcvt.s32.f32 %v2278
    %v2281 = vcvt.s32.f32 %v2279
    %2282 = vmin.xlane.f32.xlu0 %v2281
    %v2283 = vpop.xlane.xlu0 %2282
    %vm2284 = vcmp.eq.f32.partialorder %v2281, %v2283
    %v2285 = vsel %vm2284, %v2280, inf
    %2286 = vmin.xlane.f32.xlu0 %v2285
    %v2287 = vpop.xlane.xlu0 %2286
    %v2288 = vcvt.f32.s32 %v2287
    %v2289 = vcvt.f32.s32 %v2283
    %v2290 = vshll.u32 %v2289, 16
    %v2291 = vadd.s32 %v2290, %v2288
    %v2292 = vsel %vm1679, %v2229, 2147483647
    %v2293 = vand.u32 %v2292, 65535
    %v2294 = vshra.s32 %v2292, 16
    %v2295 = vcvt.s32.f32 %v2293
    %v2296 = vcvt.s32.f32 %v2294
    %2297 = vmin.xlane.f32.xlu0 %v2296
    %v2298 = vpop.xlane.xlu0 %2297
    %vm2299 = vcmp.eq.f32.partialorder %v2296, %v2298
    %v2300 = vsel %vm2299, %v2295, inf
    %2301 = vmin.xlane.f32.xlu0 %v2300
    %v2302 = vpop.xlane.xlu0 %2301
    %v2303 = vcvt.f32.s32 %v2302
    %v2304 = vcvt.f32.s32 %v2298
    %v2305 = vshll.u32 %v2304, 16
    %v2306 = vadd.s32 %v2305, %v2303
    %v2307 = vsel %vm1679, %v2230, 2147483647
    %v2308 = vand.u32 %v2307, 65535
    %v2309 = vshra.s32 %v2307, 16
    %v2310 = vcvt.s32.f32 %v2308
    %v2311 = vcvt.s32.f32 %v2309
    %2312 = vmin.xlane.f32.xlu0 %v2311
    %v2313 = vpop.xlane.xlu0 %2312
    %vm2314 = vcmp.eq.f32.partialorder %v2311, %v2313
    %v2315 = vsel %vm2314, %v2310, inf
    %2316 = vmin.xlane.f32.xlu0 %v2315
    %v2317 = vpop.xlane.xlu0 %2316
    %v2318 = vcvt.f32.s32 %v2317
    %v2319 = vcvt.f32.s32 %v2313
    %v2320 = vshll.u32 %v2319, 16
    %v2321 = vadd.s32 %v2320, %v2318
    %v2322 = vsel %vm1698, %v2231, 2147483647
    %v2323 = vand.u32 %v2322, 65535
    %v2324 = vshra.s32 %v2322, 16
    %v2325 = vcvt.s32.f32 %v2323
    %v2326 = vcvt.s32.f32 %v2324
    %2327 = vmin.xlane.f32.xlu0 %v2326
    %v2328 = vpop.xlane.xlu0 %2327
    %vm2329 = vcmp.eq.f32.partialorder %v2326, %v2328
    %v2330 = vsel %vm2329, %v2325, inf
    %2331 = vmin.xlane.f32.xlu0 %v2330
    %v2332 = vpop.xlane.xlu0 %2331
    %v2333 = vcvt.f32.s32 %v2332
    %v2334 = vcvt.f32.s32 %v2328
    %v2335 = vshll.u32 %v2334, 16
    %v2336 = vadd.s32 %v2335, %v2333
    %vm2337 = vcmp.eq.s32.totalorder %v1678, %v2246
    %vm2338 = vcmp.eq.s32.totalorder %v1678, %v2261
    %vm2339 = vcmp.eq.s32.totalorder %v1678, %v2276
    %vm2340 = vcmp.eq.s32.totalorder %v1678, %v2291
    %vm2341 = vcmp.eq.s32.totalorder %v1678, %v2306
    %vm2342 = vcmp.eq.s32.totalorder %v1678, %v2321
    %vm2343 = vcmp.eq.s32.totalorder %v1678, %v2336
    %v2344 = vsel %vm2337, 1, 0
    %v2345 = vsel %vm2338, 1, 0
    %v2346 = vsel %vm2339, 1, 0
    %v2347 = vsel %vm2340, 1, 0
    %v2348 = vsel %vm2341, 1, 0
    %v2349 = vsel %vm2342, 1, 0
    %v2350 = vsel %vm2343, 1, 0
    %v2351 = vcvt.s32.f32 %v2344
    %v2352 = vcvt.s32.f32 %v2345
    %v2353 = vcvt.s32.f32 %v2346
    %v2354 = vcvt.s32.f32 %v2347
    %v2355 = vcvt.s32.f32 %v2348
    %v2356 = vcvt.s32.f32 %v2349
    %v2357 = vcvt.s32.f32 %v2350
    %v2358 = vpack.c.bf16 %v2352, %v2351
    %v2359 = vpack.c.bf16 %v2354, %v2353
    %v2360 = vpack.c.bf16 %v2356, %v2355
    %v2361 = vpack.c.bf16 %v2357, %v2357
    %2366 = vrot.lane.b32.xlu0 %v2014, 16
    %v2367 = vpop.permute.xlu0 %2366
    %2368 = vrot.lane.b32.xlu0 %v2015, 16
    %v2369 = vpop.permute.xlu0 %2368
    %2370 = vrot.lane.b32.xlu0 %v2016, 16
    %v2371 = vpop.permute.xlu0 %2370
    %2372 = vrot.lane.b32.xlu0 %v2017, 16
    %v2373 = vpop.permute.xlu0 %2372
    %2378 = vrot.lane.b32.xlu0 %v2186, 32
    %v2379 = vpop.permute.xlu0 %2378
    %2380 = vrot.lane.b32.xlu0 %v2187, 32
    %v2381 = vpop.permute.xlu0 %2380
    %2382 = vrot.lane.b32.xlu0 %v2188, 32
    %v2383 = vpop.permute.xlu0 %2382
    %2384 = vrot.lane.b32.xlu0 %v2189, 32
    %v2385 = vpop.permute.xlu0 %2384
    %2390 = vrot.lane.b32.xlu0 %v2358, 48
    %v2391 = vpop.permute.xlu0 %2390
    %2392 = vrot.lane.b32.xlu0 %v2359, 48
    %v2393 = vpop.permute.xlu0 %2392
    %2394 = vrot.lane.b32.xlu0 %v2360, 48
    %v2395 = vpop.permute.xlu0 %2394
    %2396 = vrot.lane.b32.xlu0 %v2361, 48
    %v2397 = vpop.permute.xlu0 %2396
    %v2400 = vsel %vm1679, %v1842, %v2367
    %v2403 = vsel %vm1679, %v1843, %v2369
    %v2406 = vsel %vm1679, %v1844, %v2371
    %v2409 = vsel %vm1679, %v1845, %v2373
    %v2411 = vsel %vm732, %v2400, %v2379
    %v2413 = vsel %vm732, %v2403, %v2381
    %v2415 = vsel %vm732, %v2406, %v2383
    %v2417 = vsel %vm732, %v2409, %v2385
    %vm2418 = vcmask 392192
    %v2420 = vsel %vm2418, %v2411, %v2391
    %v2422 = vsel %vm2418, %v2413, %v2393
    %v2424 = vsel %vm2418, %v2415, %v2395
    %v2426 = vsel %vm2418, %v2417, %v2397
    %v2427 = vld [vmem:[%s6] sm:$0xf]
    %v2428 = vld [vmem:[%s6 + $0x4] sm:$0xf]
    %v2429 = vld [vmem:[%s6 + $0x8] sm:$0xf]
    %v2430 = vld [vmem:[%s6 + $0xc] sm:$0xf]
    %v2431 = vld [vmem:[%s6 + $0x10] sm:$0xf]
    %v2432 = vld [vmem:[%s6 + $0x14] sm:$0xf]
    %v2433 = vld [vmem:[%s6 + $0x18] sm:$0xf]
    %v2434 = vld [vmem:[%s6 + $0x1c] sm:$0xf]
    %v2435 = vld [vmem:[%s7] sm:$0x1]
    %v2437 = vlaneseq
    %v2438 = vshrl.u32 %v2437, 7
    %v2439 = vsub.s32 0, %v2438
    %v2440 = vrot.slane %v2435, %v2439
    %v2450 = vunpack.c.l.b16 %v2427
    %v2451 = vunpack.c.l.b16 %v2428
    %v2452 = vunpack.c.l.b16 %v2429
    %v2453 = vunpack.c.l.b16 %v2430
    %v2454 = vunpack.c.l.b16 %v2431
    %v2455 = vunpack.c.l.b16 %v2432
    %v2456 = vunpack.c.l.b16 %v2433
    %v2457 = vunpack.c.l.b16 %v2434
    %v2458 = vpack.c.b16 %v2451, %v2450
    %v2459 = vpack.c.b16 %v2453, %v2452
    %v2460 = vpack.c.b16 %v2455, %v2454
    %v2461 = vpack.c.b16 %v2457, %v2456
    %v2466 = vsel %vm1504, %v2420, 0
    %v2468 = vsel %vm1504, %v2422, 0
    %v2470 = vsel %vm1504, %v2424, 0
    %v2472 = vsel %vm1504, %v2426, 0
    %2474 = vmatprep.subr.bf16.mxu0 0
    %2475 = vmatpush1.bf16.msra.mxu0 %v2458
    %2476 = vmatprep.subr.bf16.mxu0 0
    %2477 = vmatpush1.bf16.msra.mxu0 %v2459
    %2478 = vmatprep.subr.bf16.mxu0 0
    %2479 = vmatpush1.bf16.msra.mxu0 %v2460
    %2480 = vmatprep.subr.bf16.mxu0 0
    %2481 = vmatpush1.bf16.msra.mxu0 %v2461
    %2482 = vmatprep.subr.bf16.mxu0 0
    %2483 = vmatpush1.bf16.msra.mxu0 0
    %2484 = vmatprep.subr.bf16.mxu0 0
    %2485 = vmatpush1.bf16.msra.mxu0 0
    %2486 = vmatprep.subr.bf16.mxu0 0
    %2487 = vmatpush1.bf16.msra.mxu0 0
    %2488 = vmatprep.subr.bf16.mxu0 0
    %2489 = vmatpush1.bf16.msra.mxu0 0
    %2490 = vmatprep.subr.bf16.mxu0 0
    %2491 = vmatpush1.bf16.msra.mxu0 0
    %2492 = vmatprep.subr.bf16.mxu0 0
    %2493 = vmatpush1.bf16.msra.mxu0 0
    %2494 = vmatprep.subr.bf16.mxu0 0
    %2495 = vmatpush1.bf16.msra.mxu0 0
    %2496 = vmatprep.subr.bf16.mxu0 0
    %2497 = vmatpush1.bf16.msra.mxu0 0
    %2498 = vmatprep.subr.bf16.mxu0 0
    %2499 = vmatpush1.bf16.msra.mxu0 0
    %2500 = vmatprep.subr.bf16.mxu0 0
    %2501 = vmatpush1.bf16.msra.mxu0 0
    %2502 = vmatprep.subr.bf16.mxu0 0
    %2503 = vmatpush1.bf16.msra.mxu0 0
    %2504 = vmatprep.subr.bf16.mxu0 0
    %2505 = vmatpush1.bf16.msra.mxu0 0
    %2506 = vmatprep.mubr.bf16.mxu0 0
    %2507 = vmatmul.mubr.bf16.gmra.mrb[0].mxu0 %v2466
    %v2508 = vpop.f32.mrb[0].mxu0
    %v2509 = vadd.f32 %v2440, %v2508
    %v2510 = vpop.f32.mrb[0].mxu0
    %v2511 = vpop.f32.mrb[0].mxu0
    %v2512 = vadd.f32 %v2440, %v2511
    %v2513 = vpop.f32.mrb[0].mxu0
    %2514 = vmatprep.mubr.bf16.mxu0 0
    %2515 = vmatmul.mubr.bf16.gmra.mrb[0].mxu0 %v2468
    %v2516 = vpop.f32.mrb[0].mxu0
    %v2517 = vadd.f32 %v2440, %v2516
    %v2518 = vpop.f32.mrb[0].mxu0
    %v2519 = vpop.f32.mrb[0].mxu0
    %v2520 = vadd.f32 %v2440, %v2519
    %v2521 = vpop.f32.mrb[0].mxu0
    %2522 = vmatprep.mubr.bf16.mxu0 0
    %2523 = vmatmul.mubr.bf16.gmra.mrb[0].mxu0 %v2470
    %v2524 = vpop.f32.mrb[0].mxu0
    %v2525 = vadd.f32 %v2440, %v2524
    %v2526 = vpop.f32.mrb[0].mxu0
    %v2527 = vpop.f32.mrb[0].mxu0
    %v2528 = vadd.f32 %v2440, %v2527
    %v2529 = vpop.f32.mrb[0].mxu0
    %2530 = vmatprep.mubr.bf16.mxu0 0
    %2531 = vmatmul.mubr.bf16.gmra.mrb[0].mxu0 %v2472
    %v2532 = vpop.f32.mrb[0].mxu0
    %v2533 = vadd.f32 %v2440, %v2532
    %v2534 = vpop.f32.mrb[0].mxu0
    %v2535 = vpop.f32.mrb[0].mxu0
    %v2536 = vpop.f32.mrb[0].mxu0
    %2537 = vdwg.mxu0
    %v2538 = vmax.f32 %v2509, 0.0
    %v2539 = vmax.f32 %v2512, 0.0
    %v2540 = vmax.f32 %v2517, 0.0
    %v2541 = vmax.f32 %v2520, 0.0
    %v2542 = vmax.f32 %v2525, 0.0
    %v2543 = vmax.f32 %v2528, 0.0
    %v2544 = vmax.f32 %v2533, 0.0
    %v2545 = vpack.c.bf16 %v2539, %v2538
    %v2546 = vpack.c.bf16 %v2541, %v2540
    %v2547 = vpack.c.bf16 %v2543, %v2542
    %v2548 = vpack.c.bf16 %v2544, %v2544
    %v2549 = vld [vmem:[%s8] sm:$0xf]
    %v2550 = vld [vmem:[%s8 + $0x4] sm:$0xf]
    %v2551 = vld [vmem:[%s8 + $0x8] sm:$0xf]
    %v2552 = vld [vmem:[%s8 + $0xc] sm:$0xf]
    %v2553 = vld [vmem:[%s8 + $0x10] sm:$0xf]
    %v2554 = vld [vmem:[%s8 + $0x14] sm:$0xf]
    %v2555 = vld [vmem:[%s8 + $0x18] sm:$0xf]
    %v2556 = vld [vmem:[%s8 + $0x1c] sm:$0xf]
    %v2557 = vld [vmem:[%s8 + $0x20] sm:$0xf]
    %v2558 = vld [vmem:[%s8 + $0x24] sm:$0xf]
    %v2559 = vld [vmem:[%s8 + $0x28] sm:$0xf]
    %v2560 = vld [vmem:[%s8 + $0x2c] sm:$0xf]
    %v2561 = vld [vmem:[%s8 + $0x30] sm:$0xf]
    %v2562 = vld [vmem:[%s8 + $0x34] sm:$0xf]
    %v2563 = vld [vmem:[%s8 + $0x38] sm:$0xf]
    %v2564 = vld [vmem:[%s8 + $0x3c] sm:$0xf]
    %v2565 = vld [vmem:[%s9] sm:$0x1]
    %v2567 = vlaneseq
    %v2568 = vshrl.u32 %v2567, 7
    %v2569 = vsub.s32 0, %v2568
    %v2570 = vrot.slane %v2565, %v2569
    %v2588 = vunpack.c.l.b16 %v2549
    %v2589 = vunpack.c.l.b16 %v2550
    %v2590 = vunpack.c.l.b16 %v2551
    %v2591 = vunpack.c.l.b16 %v2552
    %v2592 = vunpack.c.l.b16 %v2553
    %v2593 = vunpack.c.l.b16 %v2554
    %v2594 = vunpack.c.l.b16 %v2555
    %v2595 = vunpack.c.l.b16 %v2556
    %v2596 = vunpack.c.l.b16 %v2557
    %v2597 = vunpack.c.l.b16 %v2558
    %v2598 = vunpack.c.l.b16 %v2559
    %v2599 = vunpack.c.l.b16 %v2560
    %v2600 = vunpack.c.l.b16 %v2561
    %v2601 = vunpack.c.l.b16 %v2562
    %v2602 = vunpack.c.l.b16 %v2563
    %v2603 = vunpack.c.l.b16 %v2564
    %v2604 = vpack.c.b16 %v2589, %v2588
    %v2605 = vpack.c.b16 %v2591, %v2590
    %v2606 = vpack.c.b16 %v2593, %v2592
    %v2607 = vpack.c.b16 %v2595, %v2594
    %v2608 = vpack.c.b16 %v2597, %v2596
    %v2609 = vpack.c.b16 %v2599, %v2598
    %v2610 = vpack.c.b16 %v2601, %v2600
    %v2611 = vpack.c.b16 %v2603, %v2602
    %2620 = vmatprep.subr.bf16.mxu0 0
    %2621 = vmatpush1.bf16.msra.mxu0 %v2604
    %2622 = vmatprep.subr.bf16.mxu0 0
    %2623 = vmatpush1.bf16.msra.mxu0 %v2605
    %2624 = vmatprep.subr.bf16.mxu0 0
    %2625 = vmatpush1.bf16.msra.mxu0 %v2606
    %2626 = vmatprep.subr.bf16.mxu0 0
    %2627 = vmatpush1.bf16.msra.mxu0 %v2607
    %2628 = vmatprep.subr.bf16.mxu0 0
    %2629 = vmatpush1.bf16.msra.mxu0 %v2608
    %2630 = vmatprep.subr.bf16.mxu0 0
    %2631 = vmatpush1.bf16.msra.mxu0 %v2609
    %2632 = vmatprep.subr.bf16.mxu0 0
    %2633 = vmatpush1.bf16.msra.mxu0 %v2610
    %2634 = vmatprep.subr.bf16.mxu0 0
    %2635 = vmatpush1.bf16.msra.mxu0 %v2611
    %2636 = vmatprep.subr.bf16.mxu0 0
    %2637 = vmatpush1.bf16.msra.mxu0 0
    %2638 = vmatprep.subr.bf16.mxu0 0
    %2639 = vmatpush1.bf16.msra.mxu0 0
    %2640 = vmatprep.subr.bf16.mxu0 0
    %2641 = vmatpush1.bf16.msra.mxu0 0
    %2642 = vmatprep.subr.bf16.mxu0 0
    %2643 = vmatpush1.bf16.msra.mxu0 0
    %2644 = vmatprep.subr.bf16.mxu0 0
    %2645 = vmatpush1.bf16.msra.mxu0 0
    %2646 = vmatprep.subr.bf16.mxu0 0
    %2647 = vmatpush1.bf16.msra.mxu0 0
    %2648 = vmatprep.subr.bf16.mxu0 0
    %2649 = vmatpush1.bf16.msra.mxu0 0
    %2650 = vmatprep.subr.bf16.mxu0 0
    %2651 = vmatpush1.bf16.msra.mxu0 0
    %2652 = vmatprep.mubr.bf16.mxu0 0
    %2653 = vmatmul.mubr.bf16.gmra.mrb[0].mxu0 %v2545
    %v2654 = vpop.f32.mrb[0].mxu0
    %v2655 = vadd.f32 %v2570, %v2654
    %v2656 = vpop.f32.mrb[0].mxu0
    %v2657 = vpop.f32.mrb[0].mxu0
    %v2658 = vadd.f32 %v2570, %v2657
    %v2659 = vpop.f32.mrb[0].mxu0
    %2660 = vmatprep.mubr.bf16.mxu0 0
    %2661 = vmatmul.mubr.bf16.gmra.mrb[0].mxu0 %v2546
    %v2662 = vpop.f32.mrb[0].mxu0
    %v2663 = vadd.f32 %v2570, %v2662
    %v2664 = vpop.f32.mrb[0].mxu0
    %v2665 = vpop.f32.mrb[0].mxu0
    %v2666 = vadd.f32 %v2570, %v2665
    %v2667 = vpop.f32.mrb[0].mxu0
    %2668 = vmatprep.mubr.bf16.mxu0 0
    %2669 = vmatmul.mubr.bf16.gmra.mrb[0].mxu0 %v2547
    %v2670 = vpop.f32.mrb[0].mxu0
    %v2671 = vadd.f32 %v2570, %v2670
    %v2672 = vpop.f32.mrb[0].mxu0
    %v2673 = vpop.f32.mrb[0].mxu0
    %v2674 = vadd.f32 %v2570, %v2673
    %v2675 = vpop.f32.mrb[0].mxu0
    %2676 = vmatprep.mubr.bf16.mxu0 0
    %2677 = vmatmul.mubr.bf16.gmra.mrb[0].mxu0 %v2548
    %v2678 = vpop.f32.mrb[0].mxu0
    %v2679 = vadd.f32 %v2570, %v2678
    %v2680 = vpop.f32.mrb[0].mxu0
    %v2681 = vpop.f32.mrb[0].mxu0
    %v2682 = vpop.f32.mrb[0].mxu0
    %2683 = vdwg.mxu0
    %2691 = vrot.lane.b32.xlu0 %v2655, 32
    %v2692 = vpop.permute.xlu0 %2691
    %2693 = vrot.lane.b32.xlu0 %v2658, 32
    %v2694 = vpop.permute.xlu0 %2693
    %2695 = vrot.lane.b32.xlu0 %v2663, 32
    %v2696 = vpop.permute.xlu0 %2695
    %2697 = vrot.lane.b32.xlu0 %v2666, 32
    %v2698 = vpop.permute.xlu0 %2697
    %2699 = vrot.lane.b32.xlu0 %v2671, 32
    %v2700 = vpop.permute.xlu0 %2699
    %2701 = vrot.lane.b32.xlu0 %v2674, 32
    %v2702 = vpop.permute.xlu0 %2701
    %2703 = vrot.lane.b32.xlu0 %v2679, 32
    %v2704 = vpop.permute.xlu0 %2703
    %v2712 = vsel %vm732, %v1552, %v2692
    %v2713 = vsel %vm732, %v1555, %v2694
    %v2714 = vsel %vm732, %v1560, %v2696
    %v2715 = vsel %vm732, %v1563, %v2698
    %v2716 = vsel %vm732, %v1568, %v2700
    %v2717 = vsel %vm732, %v1571, %v2702
    %v2718 = vsel %vm732, %v1576, %v2704
    %2719 = vst [vmem:[%s10] sm:$0xff] %v2712
    %2720 = vst.msk [vmem:[%s10 + $0x8] sm:$0xff] %vm732, %v2692
    %2721 = vst [vmem:[%s10 + $0x10] sm:$0xff] %v2713
    %2722 = vst.msk [vmem:[%s10 + $0x18] sm:$0xff] %vm732, %v2694
    %2723 = vst [vmem:[%s10 + $0x20] sm:$0xff] %v2714
    %2724 = vst.msk [vmem:[%s10 + $0x28] sm:$0xff] %vm732, %v2696
    %2725 = vst [vmem:[%s10 + $0x30] sm:$0xff] %v2715
    %2726 = vst.msk [vmem:[%s10 + $0x38] sm:$0xff] %vm732, %v2698
    %2727 = vst [vmem:[%s10 + $0x40] sm:$0xff] %v2716
    %2728 = vst.msk [vmem:[%s10 + $0x48] sm:$0xff] %vm732, %v2700
    %2729 = vst [vmem:[%s10 + $0x50] sm:$0xff] %v2717
    %2730 = vst.msk [vmem:[%s10 + $0x58] sm:$0xff] %vm732, %v2702
    %2731 = vst [vmem:[%s10 + $0x60] sm:$0xf] %v2718
    %vm2732 = vcmask 257024
    %2733 = vst.msk [vmem:[%s10 + $0x68] sm:$0xf] %vm2732, %v2704
    // Predicated region
    $region42: #{span_model_forward.1} parent=1 // pred_check
      _
    $region43: #{span_model_forward.1} parent=1 // pred_check_branch
      %2735 = sbr.rel (0) target = $region45
    $region44: #{span_model_forward.1} parent=1 // pred_region
      _
    $region45: #{span_model_forward.1} parent=1 // pred_fallthru
      _
    // Predicated region
    $region46: #{span_model_forward.1} parent=1 // pred_check
      _
    $region47: #{span_model_forward.1} parent=1 // pred_check_branch
      %2737 = sbr.rel (0) target = $region49
    $region48: #{span_model_forward.1} parent=1 // pred_region
      %s2739 = ssub.s32 32, 32
      %2740 = vsyncadd [#allocation3], %s2739
      %s2742 = sshll.u32 [#allocation2], 4
      %s2743 = int_to_ptr.vmem [resolvable:$true] %s2742
      %2745 = dma.vmem_to_hbm [thread:$0]  %s2743, 32, %s11, [#allocation3]
    $region49: #{span_model_forward.1} parent=1 // pred_fallthru
      _
    // Predicated region
    $region50: #{span_model_forward.1} parent=1 // pred_check
      _
    $region51: #{span_model_forward.1} parent=1 // pred_check_branch
      %2747 = sbr.rel (0) target = $region53
    $region52: #{span_model_forward.1} parent=1 // pred_region
      _
    $region53: #{span_model_forward.1} parent=1 // pred_fallthru
      _
    // Predicated region
    $region54: #{span_model_forward.1} parent=1 // pred_check
      _
    $region55: #{span_model_forward.1} parent=1 // pred_check_branch
      %2749 = sbr.rel (0) target = $region57
    $region56: #{span_model_forward.1} parent=1 // pred_region
      %2750 = dma.done [#allocation3], 32
    $region57: #{span_model_forward.1} parent=1 // pred_fallthru
      _
    %2751 = vsyncpa [#allocation3], 1

</llo_original>
